<compile_context>
chip_gen: v6e
topology: v6e:2x2x1
jax: 0.10.0
libtpu: 0.0.40
codegen_flags: <defaults>
</compile_context>

<pallas_src>
import math

import numpy as np
import jax
import jax.numpy as jnp
from jax import lax
from jax.experimental import pallas as pl
from jax.experimental.pallas import tpu as pltpu

# ---- small, module-consistent configuration (ModelArgs analogue) ------------
DIM = 32          # args.dim
N_HEADS = 4       # args.n_heads  (model-parallel world size == 1)
HEAD_DIM = DIM // N_HEADS
HALF = HEAD_DIM // 2
BSZ = 2
SEQLEN = 8
START_POS = 0


# ----------------------------- fused Pallas kernel ---------------------------
def _fused_attention_kernel(x_ref, wqkv_ref, wo_ref, cos_ref, sin_ref, o_ref):
    """Whole forward in one kernel invocation.

    x_ref    : (B*S, D)   activations
    wqkv_ref : (D, 5D)    [wq*scale | wq_rot*scale | wk | wk_rot | wv]
    wo_ref   : (D, D)     output projection (x @ W layout)
    cos_ref  : (B*S, D)   full-width RoPE cos (pair-repeated, head/batch tiled)
    sin_ref  : (B*S, D)   full-width RoPE sin
    o_ref    : (B*S, D)   output
    """
    x = x_ref[...]
    qkv = jnp.dot(x, wqkv_ref[...], preferred_element_type=jnp.float32)  # (B*S, 5D)

    cos = cos_ref[...]
    sin = sin_ref[...]

    # RoPE as two full-width FMAs per tensor (rotate-half baked into weights).
    q = qkv[:, 0 * DIM:1 * DIM] * cos + qkv[:, 1 * DIM:2 * DIM] * sin
    k = qkv[:, 2 * DIM:3 * DIM] * cos + qkv[:, 3 * DIM:4 * DIM] * sin
    v = qkv[:, 4 * DIM:5 * DIM]

    # Causal mask for the start_pos == 0 prefill path (large finite negative).
    row = lax.broadcasted_iota(jnp.int32, (BSZ, SEQLEN, SEQLEN), 1)
    col = lax.broadcasted_iota(jnp.int32, (BSZ, SEQLEN, SEQLEN), 2)
    keep = col <= row
    neg = jnp.float32(-1e30)

    wo = wo_ref[...]
    acc = jnp.zeros((BSZ * SEQLEN, DIM), dtype=jnp.float32)

    # Static unroll over heads; batch dim rides as the batch axis of a 3-D
    # dot_general.  No concatenates; per-head result folds straight into the
    # output-projection accumulator.
    for h in range(N_HEADS):
        c0 = h * HEAD_DIM
        qh = q[:, c0:c0 + HEAD_DIM].reshape(BSZ, SEQLEN, HEAD_DIM)
        kh = k[:, c0:c0 + HEAD_DIM].reshape(BSZ, SEQLEN, HEAD_DIM)
        vh = v[:, c0:c0 + HEAD_DIM].reshape(BSZ, SEQLEN, HEAD_DIM)

        # scores[b, i, j] = qh[b, i, :] . kh[b, j, :]   (scale already in wq)
        scores = lax.dot_general(
            qh, kh, (((2,), (2,)), ((0,), (0,))),
            preferred_element_type=jnp.float32)                # (B, S, S)
        scores = jnp.where(keep, scores, neg)

        # softmax in f32 (matches F.softmax(scores.float(), dim=-1)).
        m = jnp.max(scores, axis=-1, keepdims=True)
        p = jnp.exp(scores - m)
        denom = jnp.sum(p, axis=-1, keepdims=True)
        p = p * pl.reciprocal(denom, approx=True)              # EUP, not VALU divide

        out_h = lax.dot_general(
            p, vh, (((2,), (1,)), ((0,), (0,))),
            preferred_element_type=jnp.float32)                # (B, S, Hd)

        # Fold this head's contribution into the output projection.
        acc = acc + jnp.dot(out_h.reshape(BSZ * SEQLEN, HEAD_DIM),
                            wo[c0:c0 + HEAD_DIM, :],
                            preferred_element_type=jnp.float32)

    o_ref[...] = acc   # single lane-dense store


# ------------------------- offline weight / table prep ------------------------
def _rotate_half_cols(w):
    """Columns permuted/negated so that x @ w_rot == rotate_pairs(x @ w)."""
    w = np.asarray(w)
    w_rot = np.empty_like(w)
    w_rot[:, 0::2] = -w[:, 1::2]
    w_rot[:, 1::2] = w[:, 0::2]
    return w_rot


def prepare_fused_weights(wq, wk, wv):
    """One-time prep: add rotate-half copies, fold score scale into wq, concat."""
    wq_np, wk_np, wv_np = (np.asarray(wq), np.asarray(wk), np.asarray(wv))
    scale = 1.0 / math.sqrt(HEAD_DIM)
    wq_s = wq_np * scale
    wq_rot_s = _rotate_half_cols(wq_np) * scale
    wk_rot = _rotate_half_cols(wk_np)
    wqkv = np.concatenate([wq_s, wq_rot_s, wk_np, wk_rot, wv_np], axis=1)
    return jnp.asarray(wqkv, dtype=jnp.float32)                # (D, 5D)


def prepare_rope_tables(freqs_cos_half, freqs_sin_half):
    """(S, Hd//2) tables -> full-width (B*S, D) pair-repeated, head/batch tiled."""
    c = np.asarray(freqs_cos_half)
    s = np.asarray(freqs_sin_half)
    c_hd = np.repeat(c, 2, axis=1)                             # (S, Hd)
    s_hd = np.repeat(s, 2, axis=1)
    c_full = np.tile(np.tile(c_hd, (1, N_HEADS)), (BSZ, 1))    # (B*S, D)
    s_full = np.tile(np.tile(s_hd, (1, N_HEADS)), (BSZ, 1))
    return (jnp.asarray(c_full, dtype=jnp.float32),
            jnp.asarray(s_full, dtype=jnp.float32))


def attention_forward_fused(x, wqkv, wo, cos_full, sin_full):
    B, S, D = x.shape
    x2d = x.reshape(B * S, D)
    vmem = pltpu.MemorySpace.VMEM
    out2d = pl.pallas_call(
        _fused_attention_kernel,
        out_shape=jax.ShapeDtypeStruct((B * S, D), jnp.float32),
        in_specs=[pl.BlockSpec(memory_space=vmem) for _ in range(5)],
        out_specs=pl.BlockSpec(memory_space=vmem),
    )(x2d, wqkv, wo, cos_full, sin_full)
    return out2d.reshape(B, S, D)


# ----------------------- pure-JAX reference (PyTorch math) --------------------
def attention_reference(x, wq, wk, wv, wo, freqs_cos, freqs_sin, mask):
    B, S, D = x.shape
    H, Hd = N_HEADS, HEAD_DIM
    x2d = x.reshape(B * S, D)
    xq = (x2d @ wq).reshape(B, S, H, Hd)
    xk = (x2d @ wk).reshape(B, S, H, Hd)
    xv = (x2d @ wv).reshape(B, S, H, Hd)

    def rope(t):
        tr = t.reshape(B, S, H, Hd // 2, 2)
        a, b = tr[..., 0], tr[..., 1]
        c = freqs_cos[None, :, None, :]
        s = freqs_sin[None, :, None, :]
        out = jnp.stack([a * c - b * s, a * s + b * c], axis=-1)
        return out.reshape(B, S, H, Hd)

    xq, xk = rope(xq), rope(xk)
    qh = jnp.transpose(xq, (0, 2, 1, 3))
    kh = jnp.transpose(xk, (0, 2, 1, 3))
    vh = jnp.transpose(xv, (0, 2, 1, 3))
    scores = jnp.einsum('bhqd,bhkd->bhqk', qh, kh) / math.sqrt(Hd)
    scores = scores + mask[None, None]
    scores = jax.nn.softmax(scores.astype(jnp.float32), axis=-1)
    out = jnp.einsum('bhqk,bhkd->bhqd', scores, vh)
    out = jnp.transpose(out, (0, 2, 1, 3)).reshape(B * S, H * Hd)
    return (out @ wo).reshape(B, S, D)


# ------------------------------------ main -------------------------------------
if __name__ == "__main__":
    key = jax.random.PRNGKey(0)
    kx, kq, kk, kv, ko = jax.random.split(key, 5)

    x = jax.random.normal(kx, (BSZ, SEQLEN, DIM), dtype=jnp.float32)
    wq = jax.random.normal(kq, (DIM, DIM), dtype=jnp.float32) * 0.05
    wk = jax.random.normal(kk, (DIM, DIM), dtype=jnp.float32) * 0.05
    wv = jax.random.normal(kv, (DIM, DIM), dtype=jnp.float32) * 0.05
    wo = jax.random.normal(ko, (DIM, DIM), dtype=jnp.float32) * 0.05

    # LLaMA-style freqs_cis (stored as cos / sin), shape (S, Hd//2)
    inv_freq = 1.0 / (10000.0 ** (np.arange(0, HEAD_DIM, 2, dtype=np.float32)
                                  / HEAD_DIM))
    t = np.arange(SEQLEN, dtype=np.float32)
    freqs = np.outer(t, inv_freq)
    freqs_cos = jnp.asarray(np.cos(freqs), dtype=jnp.float32)
    freqs_sin = jnp.asarray(np.sin(freqs), dtype=jnp.float32)

    # causal mask for start_pos == 0 prefill (reference only; kernel builds
    # its own in-kernel with broadcasted_iota)
    mask_np = np.triu(np.full((SEQLEN, SEQLEN), float("-inf"), np.float32), k=1)
    mask = jnp.asarray(mask_np)

    # one-time (offline) weight / table preprocessing for the fused kernel
    wqkv = prepare_fused_weights(wq, wk, wv)
    cos_full, sin_full = prepare_rope_tables(np.cos(freqs), np.sin(freqs))

    out = attention_forward_fused(x, wqkv, wo, cos_full, sin_full)
    out = jax.block_until_ready(out)

    ref = attention_reference(x, wq, wk, wv, wo, freqs_cos, freqs_sin, mask)
    ref = jax.block_until_ready(ref)

    assert out.shape == (BSZ, SEQLEN, DIM) and out.dtype == jnp.float32
    if not np.allclose(np.asarray(out), np.asarray(ref), rtol=2e-2, atol=2e-3):
        max_err = float(np.max(np.abs(np.asarray(out) - np.asarray(ref))))
        raise AssertionError(f"Pallas output mismatch, max abs err = {max_err}")

    print("KERNEL_OK")
</pallas_src>

<mosaic_0001>
module attributes {stable_mosaic.version = 11 : i64} {
  func.func @_fused_attention_kernel(%arg0: memref<16x32xf32, #tpu.memory_space<vmem>>, %arg1: memref<32x160xf32, #tpu.memory_space<vmem>>, %arg2: memref<32x32xf32, #tpu.memory_space<vmem>>, %arg3: memref<16x32xf32, #tpu.memory_space<vmem>>, %arg4: memref<16x32xf32, #tpu.memory_space<vmem>>, %arg5: memref<16x32xf32, #tpu.memory_space<vmem>>) attributes {dimension_semantics = [], scalar_prefetch = 0 : i64, scratch_operands = 0 : i64, tpu.core_type = #tpu.core_type<tc>} {
    %c0 = arith.constant 0 : index
    %c0_0 = arith.constant 0 : index
    %0 = vector.load %arg0[%c0, %c0_0] : memref<16x32xf32, #tpu.memory_space<vmem>>, vector<16x32xf32>
    %c0_1 = arith.constant 0 : index
    %c0_2 = arith.constant 0 : index
    %1 = vector.load %arg1[%c0_1, %c0_2] : memref<32x160xf32, #tpu.memory_space<vmem>>, vector<32x160xf32>
    %cst = arith.constant dense<0.000000e+00> : vector<16x160xf32>
    %2 = tpu.matmul %0, %1, %cst {dimension_numbers = #tpu.dot_dimension_numbers<[1], [0], [0], [1], [0, 0, 1, 1], [], []>} : vector<16x32xf32>, vector<32x160xf32>, vector<16x160xf32> -> vector<16x160xf32>
    %c0_3 = arith.constant 0 : index
    %c0_4 = arith.constant 0 : index
    %3 = vector.load %arg3[%c0_3, %c0_4] : memref<16x32xf32, #tpu.memory_space<vmem>>, vector<16x32xf32>
    %c0_5 = arith.constant 0 : index
    %c0_6 = arith.constant 0 : index
    %4 = vector.load %arg4[%c0_5, %c0_6] : memref<16x32xf32, #tpu.memory_space<vmem>>, vector<16x32xf32>
    %5 = vector.extract_strided_slice %2 {offsets = [0, 0], sizes = [16, 32], strides = [1, 1]} : vector<16x160xf32> to vector<16x32xf32>
    %6 = arith.mulf %5, %3 : vector<16x32xf32>
    %7 = vector.extract_strided_slice %2 {offsets = [0, 32], sizes = [16, 32], strides = [1, 1]} : vector<16x160xf32> to vector<16x32xf32>
    %8 = arith.mulf %7, %4 : vector<16x32xf32>
    %9 = arith.addf %6, %8 : vector<16x32xf32>
    %10 = vector.extract_strided_slice %2 {offsets = [0, 64], sizes = [16, 32], strides = [1, 1]} : vector<16x160xf32> to vector<16x32xf32>
    %11 = arith.mulf %10, %3 : vector<16x32xf32>
    %12 = vector.extract_strided_slice %2 {offsets = [0, 96], sizes = [16, 32], strides = [1, 1]} : vector<16x160xf32> to vector<16x32xf32>
    %13 = arith.mulf %12, %4 : vector<16x32xf32>
    %14 = arith.addf %11, %13 : vector<16x32xf32>
    %15 = vector.extract_strided_slice %2 {offsets = [0, 128], sizes = [16, 32], strides = [1, 1]} : vector<16x160xf32> to vector<16x32xf32>
    %16 = tpu.iota {dimensions = array<i32: 1>} : vector<2x8x8xi32>
    %17 = tpu.iota {dimensions = array<i32: 2>} : vector<2x8x8xi32>
    %18 = arith.cmpi sle, %17, %16 : vector<2x8x8xi32>
    %c0_7 = arith.constant 0 : index
    %c0_8 = arith.constant 0 : index
    %19 = vector.load %arg2[%c0_7, %c0_8] : memref<32x32xf32, #tpu.memory_space<vmem>>, vector<32x32xf32>
    %cst_9 = arith.constant 0.000000e+00 : f32
    %20 = vector.broadcast %cst_9 : f32 to vector<16x32xf32>
    %21 = vector.extract_strided_slice %9 {offsets = [0, 0], sizes = [16, 8], strides = [1, 1]} : vector<16x32xf32> to vector<16x8xf32>
    %22 = vector.shape_cast %21 : vector<16x8xf32> to vector<2x8x8xf32>
    %23 = vector.extract_strided_slice %14 {offsets = [0, 0], sizes = [16, 8], strides = [1, 1]} : vector<16x32xf32> to vector<16x8xf32>
    %24 = vector.shape_cast %23 : vector<16x8xf32> to vector<2x8x8xf32>
    %25 = vector.extract_strided_slice %15 {offsets = [0, 0], sizes = [16, 8], strides = [1, 1]} : vector<16x32xf32> to vector<16x8xf32>
    %26 = vector.shape_cast %25 : vector<16x8xf32> to vector<2x8x8xf32>
    %cst_10 = arith.constant dense<0.000000e+00> : vector<2x8x8xf32>
    %27 = tpu.matmul %22, %24, %cst_10 {dimension_numbers = #tpu.dot_dimension_numbers<[2], [2], [1], [1], [0, 0, 0, 1, 1, 1], [0], [0]>} : vector<2x8x8xf32>, vector<2x8x8xf32>, vector<2x8x8xf32> -> vector<2x8x8xf32>
    %cst_11 = arith.constant -1.000000e+30 : f32
    %28 = vector.broadcast %cst_11 : f32 to vector<2x8x8xf32>
    %29 = arith.select %18, %27, %28 : vector<2x8x8xi1>, vector<2x8x8xf32>
    %cst_12 = arith.constant dense<0xFF800000> : vector<2x8xf32>
    %30 = vector.multi_reduction <maximumf>, %29, %cst_12 [2] : vector<2x8x8xf32> to vector<2x8xf32>
    %31 = vector.shape_cast %30 : vector<2x8xf32> to vector<2x8x1xf32>
    %32 = vector.broadcast %31 : vector<2x8x1xf32> to vector<2x8x8xf32>
    %33 = arith.subf %29, %32 : vector<2x8x8xf32>
    %34 = math.exp %33 : vector<2x8x8xf32>
    %cst_13 = arith.constant dense<0.000000e+00> : vector<2x8xf32>
    %35 = vector.multi_reduction <add>, %34, %cst_13 [2] : vector<2x8x8xf32> to vector<2x8xf32>
    %36 = vector.shape_cast %35 : vector<2x8xf32> to vector<2x8x1xf32>
    %37 = tpu.reciprocal %36 {approx = true} : vector<2x8x1xf32> -> vector<2x8x1xf32>
    %38 = vector.broadcast %37 : vector<2x8x1xf32> to vector<2x8x8xf32>
    %39 = arith.mulf %34, %38 : vector<2x8x8xf32>
    %cst_14 = arith.constant dense<0.000000e+00> : vector<2x8x8xf32>
    %40 = tpu.matmul %39, %26, %cst_14 {dimension_numbers = #tpu.dot_dimension_numbers<[2], [1], [1], [2], [0, 0, 0, 1, 1, 2], [0], [0]>} : vector<2x8x8xf32>, vector<2x8x8xf32>, vector<2x8x8xf32> -> vector<2x8x8xf32>
    %41 = vector.shape_cast %40 : vector<2x8x8xf32> to vector<16x8xf32>
    %42 = vector.extract_strided_slice %19 {offsets = [0, 0], sizes = [8, 32], strides = [1, 1]} : vector<32x32xf32> to vector<8x32xf32>
    %cst_15 = arith.constant dense<0.000000e+00> : vector<16x32xf32>
    %43 = tpu.matmul %41, %42, %cst_15 {dimension_numbers = #tpu.dot_dimension_numbers<[1], [0], [0], [1], [0, 0, 1, 1], [], []>} : vector<16x8xf32>, vector<8x32xf32>, vector<16x32xf32> -> vector<16x32xf32>
    %44 = arith.addf %20, %43 : vector<16x32xf32>
    %45 = vector.extract_strided_slice %9 {offsets = [0, 8], sizes = [16, 8], strides = [1, 1]} : vector<16x32xf32> to vector<16x8xf32>
    %46 = vector.shape_cast %45 : vector<16x8xf32> to vector<2x8x8xf32>
    %47 = vector.extract_strided_slice %14 {offsets = [0, 8], sizes = [16, 8], strides = [1, 1]} : vector<16x32xf32> to vector<16x8xf32>
    %48 = vector.shape_cast %47 : vector<16x8xf32> to vector<2x8x8xf32>
    %49 = vector.extract_strided_slice %15 {offsets = [0, 8], sizes = [16, 8], strides = [1, 1]} : vector<16x32xf32> to vector<16x8xf32>
    %50 = vector.shape_cast %49 : vector<16x8xf32> to vector<2x8x8xf32>
    %cst_16 = arith.constant dense<0.000000e+00> : vector<2x8x8xf32>
    %51 = tpu.matmul %46, %48, %cst_16 {dimension_numbers = #tpu.dot_dimension_numbers<[2], [2], [1], [1], [0, 0, 0, 1, 1, 1], [0], [0]>} : vector<2x8x8xf32>, vector<2x8x8xf32>, vector<2x8x8xf32> -> vector<2x8x8xf32>
    %cst_17 = arith.constant -1.000000e+30 : f32
    %52 = vector.broadcast %cst_17 : f32 to vector<2x8x8xf32>
    %53 = arith.select %18, %51, %52 : vector<2x8x8xi1>, vector<2x8x8xf32>
    %cst_18 = arith.constant dense<0xFF800000> : vector<2x8xf32>
    %54 = vector.multi_reduction <maximumf>, %53, %cst_18 [2] : vector<2x8x8xf32> to vector<2x8xf32>
    %55 = vector.shape_cast %54 : vector<2x8xf32> to vector<2x8x1xf32>
    %56 = vector.broadcast %55 : vector<2x8x1xf32> to vector<2x8x8xf32>
    %57 = arith.subf %53, %56 : vector<2x8x8xf32>
    %58 = math.exp %57 : vector<2x8x8xf32>
    %cst_19 = arith.constant dense<0.000000e+00> : vector<2x8xf32>
    %59 = vector.multi_reduction <add>, %58, %cst_19 [2] : vector<2x8x8xf32> to vector<2x8xf32>
    %60 = vector.shape_cast %59 : vector<2x8xf32> to vector<2x8x1xf32>
    %61 = tpu.reciprocal %60 {approx = true} : vector<2x8x1xf32> -> vector<2x8x1xf32>
    %62 = vector.broadcast %61 : vector<2x8x1xf32> to vector<2x8x8xf32>
    %63 = arith.mulf %58, %62 : vector<2x8x8xf32>
    %cst_20 = arith.constant dense<0.000000e+00> : vector<2x8x8xf32>
    %64 = tpu.matmul %63, %50, %cst_20 {dimension_numbers = #tpu.dot_dimension_numbers<[2], [1], [1], [2], [0, 0, 0, 1, 1, 2], [0], [0]>} : vector<2x8x8xf32>, vector<2x8x8xf32>, vector<2x8x8xf32> -> vector<2x8x8xf32>
    %65 = vector.shape_cast %64 : vector<2x8x8xf32> to vector<16x8xf32>
    %66 = vector.extract_strided_slice %19 {offsets = [8, 0], sizes = [8, 32], strides = [1, 1]} : vector<32x32xf32> to vector<8x32xf32>
    %cst_21 = arith.constant dense<0.000000e+00> : vector<16x32xf32>
    %67 = tpu.matmul %65, %66, %cst_21 {dimension_numbers = #tpu.dot_dimension_numbers<[1], [0], [0], [1], [0, 0, 1, 1], [], []>} : vector<16x8xf32>, vector<8x32xf32>, vector<16x32xf32> -> vector<16x32xf32>
    %68 = arith.addf %44, %67 : vector<16x32xf32>
    %69 = vector.extract_strided_slice %9 {offsets = [0, 16], sizes = [16, 8], strides = [1, 1]} : vector<16x32xf32> to vector<16x8xf32>
    %70 = vector.shape_cast %69 : vector<16x8xf32> to vector<2x8x8xf32>
    %71 = vector.extract_strided_slice %14 {offsets = [0, 16], sizes = [16, 8], strides = [1, 1]} : vector<16x32xf32> to vector<16x8xf32>
    %72 = vector.shape_cast %71 : vector<16x8xf32> to vector<2x8x8xf32>
    %73 = vector.extract_strided_slice %15 {offsets = [0, 16], sizes = [16, 8], strides = [1, 1]} : vector<16x32xf32> to vector<16x8xf32>
    %74 = vector.shape_cast %73 : vector<16x8xf32> to vector<2x8x8xf32>
    %cst_22 = arith.constant dense<0.000000e+00> : vector<2x8x8xf32>
    %75 = tpu.matmul %70, %72, %cst_22 {dimension_numbers = #tpu.dot_dimension_numbers<[2], [2], [1], [1], [0, 0, 0, 1, 1, 1], [0], [0]>} : vector<2x8x8xf32>, vector<2x8x8xf32>, vector<2x8x8xf32> -> vector<2x8x8xf32>
    %cst_23 = arith.constant -1.000000e+30 : f32
    %76 = vector.broadcast %cst_23 : f32 to vector<2x8x8xf32>
    %77 = arith.select %18, %75, %76 : vector<2x8x8xi1>, vector<2x8x8xf32>
    %cst_24 = arith.constant dense<0xFF800000> : vector<2x8xf32>
    %78 = vector.multi_reduction <maximumf>, %77, %cst_24 [2] : vector<2x8x8xf32> to vector<2x8xf32>
    %79 = vector.shape_cast %78 : vector<2x8xf32> to vector<2x8x1xf32>
    %80 = vector.broadcast %79 : vector<2x8x1xf32> to vector<2x8x8xf32>
    %81 = arith.subf %77, %80 : vector<2x8x8xf32>
    %82 = math.exp %81 : vector<2x8x8xf32>
    %cst_25 = arith.constant dense<0.000000e+00> : vector<2x8xf32>
    %83 = vector.multi_reduction <add>, %82, %cst_25 [2] : vector<2x8x8xf32> to vector<2x8xf32>
    %84 = vector.shape_cast %83 : vector<2x8xf32> to vector<2x8x1xf32>
    %85 = tpu.reciprocal %84 {approx = true} : vector<2x8x1xf32> -> vector<2x8x1xf32>
    %86 = vector.broadcast %85 : vector<2x8x1xf32> to vector<2x8x8xf32>
    %87 = arith.mulf %82, %86 : vector<2x8x8xf32>
    %cst_26 = arith.constant dense<0.000000e+00> : vector<2x8x8xf32>
    %88 = tpu.matmul %87, %74, %cst_26 {dimension_numbers = #tpu.dot_dimension_numbers<[2], [1], [1], [2], [0, 0, 0, 1, 1, 2], [0], [0]>} : vector<2x8x8xf32>, vector<2x8x8xf32>, vector<2x8x8xf32> -> vector<2x8x8xf32>
    %89 = vector.shape_cast %88 : vector<2x8x8xf32> to vector<16x8xf32>
    %90 = vector.extract_strided_slice %19 {offsets = [16, 0], sizes = [8, 32], strides = [1, 1]} : vector<32x32xf32> to vector<8x32xf32>
    %cst_27 = arith.constant dense<0.000000e+00> : vector<16x32xf32>
    %91 = tpu.matmul %89, %90, %cst_27 {dimension_numbers = #tpu.dot_dimension_numbers<[1], [0], [0], [1], [0, 0, 1, 1], [], []>} : vector<16x8xf32>, vector<8x32xf32>, vector<16x32xf32> -> vector<16x32xf32>
    %92 = arith.addf %68, %91 : vector<16x32xf32>
    %93 = vector.extract_strided_slice %9 {offsets = [0, 24], sizes = [16, 8], strides = [1, 1]} : vector<16x32xf32> to vector<16x8xf32>
    %94 = vector.shape_cast %93 : vector<16x8xf32> to vector<2x8x8xf32>
    %95 = vector.extract_strided_slice %14 {offsets = [0, 24], sizes = [16, 8], strides = [1, 1]} : vector<16x32xf32> to vector<16x8xf32>
    %96 = vector.shape_cast %95 : vector<16x8xf32> to vector<2x8x8xf32>
    %97 = vector.extract_strided_slice %15 {offsets = [0, 24], sizes = [16, 8], strides = [1, 1]} : vector<16x32xf32> to vector<16x8xf32>
    %98 = vector.shape_cast %97 : vector<16x8xf32> to vector<2x8x8xf32>
    %cst_28 = arith.constant dense<0.000000e+00> : vector<2x8x8xf32>
    %99 = tpu.matmul %94, %96, %cst_28 {dimension_numbers = #tpu.dot_dimension_numbers<[2], [2], [1], [1], [0, 0, 0, 1, 1, 1], [0], [0]>} : vector<2x8x8xf32>, vector<2x8x8xf32>, vector<2x8x8xf32> -> vector<2x8x8xf32>
    %cst_29 = arith.constant -1.000000e+30 : f32
    %100 = vector.broadcast %cst_29 : f32 to vector<2x8x8xf32>
    %101 = arith.select %18, %99, %100 : vector<2x8x8xi1>, vector<2x8x8xf32>
    %cst_30 = arith.constant dense<0xFF800000> : vector<2x8xf32>
    %102 = vector.multi_reduction <maximumf>, %101, %cst_30 [2] : vector<2x8x8xf32> to vector<2x8xf32>
    %103 = vector.shape_cast %102 : vector<2x8xf32> to vector<2x8x1xf32>
    %104 = vector.broadcast %103 : vector<2x8x1xf32> to vector<2x8x8xf32>
    %105 = arith.subf %101, %104 : vector<2x8x8xf32>
    %106 = math.exp %105 : vector<2x8x8xf32>
    %cst_31 = arith.constant dense<0.000000e+00> : vector<2x8xf32>
    %107 = vector.multi_reduction <add>, %106, %cst_31 [2] : vector<2x8x8xf32> to vector<2x8xf32>
    %108 = vector.shape_cast %107 : vector<2x8xf32> to vector<2x8x1xf32>
    %109 = tpu.reciprocal %108 {approx = true} : vector<2x8x1xf32> -> vector<2x8x1xf32>
    %110 = vector.broadcast %109 : vector<2x8x1xf32> to vector<2x8x8xf32>
    %111 = arith.mulf %106, %110 : vector<2x8x8xf32>
    %cst_32 = arith.constant dense<0.000000e+00> : vector<2x8x8xf32>
    %112 = tpu.matmul %111, %98, %cst_32 {dimension_numbers = #tpu.dot_dimension_numbers<[2], [1], [1], [2], [0, 0, 0, 1, 1, 2], [0], [0]>} : vector<2x8x8xf32>, vector<2x8x8xf32>, vector<2x8x8xf32> -> vector<2x8x8xf32>
    %113 = vector.shape_cast %112 : vector<2x8x8xf32> to vector<16x8xf32>
    %114 = vector.extract_strided_slice %19 {offsets = [24, 0], sizes = [8, 32], strides = [1, 1]} : vector<32x32xf32> to vector<8x32xf32>
    %cst_33 = arith.constant dense<0.000000e+00> : vector<16x32xf32>
    %115 = tpu.matmul %113, %114, %cst_33 {dimension_numbers = #tpu.dot_dimension_numbers<[1], [0], [0], [1], [0, 0, 1, 1], [], []>} : vector<16x8xf32>, vector<8x32xf32>, vector<16x32xf32> -> vector<16x32xf32>
    %116 = arith.addf %92, %115 : vector<16x32xf32>
    %c0_34 = arith.constant 0 : index
    %c0_35 = arith.constant 0 : index
    %117 = vector.load %arg5[%c0_34, %c0_35] : memref<16x32xf32, #tpu.memory_space<vmem>>, vector<16x32xf32>
    tpu.vector_store %arg5[%c0_34, %c0_35], %116 {strides = array<i32>} : memref<16x32xf32, #tpu.memory_space<vmem>>, vector<16x32xf32>,
    return
  }
}

</mosaic_0001>

<llo_original>
// kernel: tpu_custom_call.1
$region0: #{tpu_custom_call.1}
  #allocation0 [shape = 'u32[]', space=smem, size = 0x4, offset = 0x4, fixed_abs, tag = 'smem constant byte address 0x4 - core index']
  #allocation1 [shape = 'u32[144,128]{1,0:T(1,128)}', space=vmem, size = 0x12000, scoped, tag = 'internal scratch']
  %s0 = inlined_call_operand.hbm [shape: f32[16,32], index: 0, kind: input, shape index: {}]
  %s1 = inlined_call_operand.hbm [shape: f32[32,160], index: 1, kind: input, shape index: {}]
  %s2 = inlined_call_operand.hbm [shape: f32[32,32], index: 2, kind: input, shape index: {}]
  %s3 = inlined_call_operand.hbm [shape: f32[16,32], index: 3, kind: input, shape index: {}]
  %s4 = inlined_call_operand.hbm [shape: f32[16,32], index: 4, kind: input, shape index: {}]
  %s5 = inlined_call_operand.hbm [shape: f32[16,32], index: 5, kind: output, shape index: {}]
  %s6 = sld [smem:[#allocation0]]
  $region50: #{tpu_custom_call.1} parent=0
    _
  %s8 = ssub.s32 1, %s6
  %s9 = scalar_select 0, %s8, %s6
  $region1: #{tpu_custom_call.1} parent=0
    #allocation2 [shape = 'u8[8192]{0}', space=vmem, size = 0x2000, scoped, tag = 'input window, operand 0, single buffered']
    #allocation3 [shape = 's32[1]{0}', space=sflag, size = 0x4, scoped, tag = 'scoped memory for tpu_custom_call.1']
    #allocation4 [shape = 's32[1]{0}', space=sflag, size = 0x4, scoped, tag = 'scoped memory for tpu_custom_call.1']
    #allocation5 [shape = 'u8[32768]{0}', space=vmem, size = 0x8000, scoped, tag = 'input window, operand 1, single buffered']
    #allocation6 [shape = 's32[1]{0}', space=sflag, size = 0x4, scoped, tag = 'scoped memory for tpu_custom_call.1']
    #allocation7 [shape = 'u8[16384]{0}', space=vmem, size = 0x4000, scoped, tag = 'input window, operand 2, single buffered']
    #allocation8 [shape = 'u8[8192]{0}', space=vmem, size = 0x2000, scoped, tag = 'input window, operand 3, single buffered']
    #allocation9 [shape = 's32[1]{0}', space=sflag, size = 0x4, scoped, tag = 'scoped memory for tpu_custom_call.1']
    #allocation10 [shape = 'u8[8192]{0}', space=vmem, size = 0x2000, scoped, tag = 'input window, operand 4, single buffered']
    #allocation11 [shape = 'u8[8192]{0}', space=vmem, size = 0x2000, scoped, tag = 'output window, operand 0, single buffered']
    %10 = vsyncpa [#allocation3], 0
    %11 = vsyncpa [#allocation6], 0
    %12 = vsyncpa [#allocation9], 0
    %13 = vsyncpa [#allocation4], 0
    // Predicated region
    $region2: #{tpu_custom_call.1} parent=1 // pred_check
      _
    $region3: #{tpu_custom_call.1} parent=1 // pred_check_branch
      %15 = sbr.rel (0) target = $region5
    $region4: #{tpu_custom_call.1} parent=1 // pred_region
      %s17 = ssub.s32 256, 256
      %18 = vsyncadd [#allocation3], %s17
      %s19 = sshll.u32 [#allocation2], 4
      %s20 = int_to_ptr.vmem [resolvable:$true] %s19
      %25 = dma.hbm_to_vmem [thread:$0]  %s0, 256, %s20, [#allocation3], 128, 128, 8
    $region5: #{tpu_custom_call.1} parent=1 // pred_fallthru
      _
    // Predicated region
    $region6: #{tpu_custom_call.1} parent=1 // pred_check
      _
    $region7: #{tpu_custom_call.1} parent=1 // pred_check_branch
      %27 = sbr.rel (0) target = $region9
    $region8: #{tpu_custom_call.1} parent=1 // pred_region
      %s29 = ssub.s32 1024, 1024
      %30 = vsyncadd [#allocation6], %s29
      %s31 = sshll.u32 [#allocation5], 4
      %s32 = int_to_ptr.vmem [resolvable:$true] %s31
      %37 = dma.hbm_to_vmem [thread:$0]  %s1, 1024, %s32, [#allocation6], 256, 256, 16
    $region9: #{tpu_custom_call.1} parent=1 // pred_fallthru
      _
    // Predicated region
    $region10: #{tpu_custom_call.1} parent=1 // pred_check
      _
    $region11: #{tpu_custom_call.1} parent=1 // pred_check_branch
      %39 = sbr.rel (0) target = $region13
    $region12: #{tpu_custom_call.1} parent=1 // pred_region
      %s41 = ssub.s32 512, 512
      %42 = vsyncadd [#allocation6], %s41
      %s43 = sshll.u32 [#allocation7], 4
      %s44 = int_to_ptr.vmem [resolvable:$true] %s43
      %49 = dma.hbm_to_vmem [thread:$0]  %s2, 512, %s44, [#allocation6], 128, 128, 8
    $region13: #{tpu_custom_call.1} parent=1 // pred_fallthru
      _
    // Predicated region
    $region14: #{tpu_custom_call.1} parent=1 // pred_check
      _
    $region15: #{tpu_custom_call.1} parent=1 // pred_check_branch
      %51 = sbr.rel (0) target = $region17
    $region16: #{tpu_custom_call.1} parent=1 // pred_region
      %s53 = ssub.s32 256, 256
      %54 = vsyncadd [#allocation9], %s53
      %s55 = sshll.u32 [#allocation8], 4
      %s56 = int_to_ptr.vmem [resolvable:$true] %s55
      %61 = dma.hbm_to_vmem [thread:$0]  %s3, 256, %s56, [#allocation9], 128, 128, 8
    $region17: #{tpu_custom_call.1} parent=1 // pred_fallthru
      _
    // Predicated region
    $region18: #{tpu_custom_call.1} parent=1 // pred_check
      _
    $region19: #{tpu_custom_call.1} parent=1 // pred_check_branch
      %63 = sbr.rel (0) target = $region21
    $region20: #{tpu_custom_call.1} parent=1 // pred_region
      %s65 = ssub.s32 256, 256
      %66 = vsyncadd [#allocation9], %s65
      %s67 = sshll.u32 [#allocation10], 4
      %s68 = int_to_ptr.vmem [resolvable:$true] %s67
      %73 = dma.hbm_to_vmem [thread:$0]  %s4, 256, %s68, [#allocation9], 128, 128, 8
    $region21: #{tpu_custom_call.1} parent=1 // pred_fallthru
      _
    // Predicated region
    $region22: #{tpu_custom_call.1} parent=1 // pred_check
      _
    $region23: #{tpu_custom_call.1} parent=1 // pred_check_branch
      %75 = sbr.rel (0) target = $region25
    $region24: #{tpu_custom_call.1} parent=1 // pred_region
      %76 = dma.done [#allocation3], 256
    $region25: #{tpu_custom_call.1} parent=1 // pred_fallthru
      _
    // Predicated region
    $region26: #{tpu_custom_call.1} parent=1 // pred_check
      _
    $region27: #{tpu_custom_call.1} parent=1 // pred_check_branch
      %78 = sbr.rel (0) target = $region29
    $region28: #{tpu_custom_call.1} parent=1 // pred_region
      %79 = dma.done [#allocation6], 1024
    $region29: #{tpu_custom_call.1} parent=1 // pred_fallthru
      _
    // Predicated region
    $region30: #{tpu_custom_call.1} parent=1 // pred_check
      _
    $region31: #{tpu_custom_call.1} parent=1 // pred_check_branch
      %81 = sbr.rel (0) target = $region33
    $region32: #{tpu_custom_call.1} parent=1 // pred_region
      %82 = dma.done [#allocation6], 512
    $region33: #{tpu_custom_call.1} parent=1 // pred_fallthru
      _
    // Predicated region
    $region34: #{tpu_custom_call.1} parent=1 // pred_check
      _
    $region35: #{tpu_custom_call.1} parent=1 // pred_check_branch
      %84 = sbr.rel (0) target = $region37
    $region36: #{tpu_custom_call.1} parent=1 // pred_region
      %85 = dma.done [#allocation9], 256
    $region37: #{tpu_custom_call.1} parent=1 // pred_fallthru
      _
    // Predicated region
    $region38: #{tpu_custom_call.1} parent=1 // pred_check
      _
    $region39: #{tpu_custom_call.1} parent=1 // pred_check_branch
      %87 = sbr.rel (0) target = $region41
    $region40: #{tpu_custom_call.1} parent=1 // pred_region
      %88 = dma.done [#allocation9], 256
    $region41: #{tpu_custom_call.1} parent=1 // pred_fallthru
      _
    %v89 = vld [vmem:[#allocation2] sm:$0xff]
    %v90 = vld [vmem:[#allocation2 + $0x8] sm:$0xff]
    %v91 = vld [vmem:[#allocation5] sm:$0xff]
    %v92 = vld [vmem:[#allocation5 + $0x8] sm:$0xff]
    %v93 = vld [vmem:[#allocation5 + $0x10] sm:$0xff]
    %v94 = vld [vmem:[#allocation5 + $0x18] sm:$0xff]
    %v95 = vld [vmem:[#allocation5 + $0x20] sm:$0xff]
    %v96 = vld [vmem:[#allocation5 + $0x28] sm:$0xff]
    %v97 = vld [vmem:[#allocation5 + $0x30] sm:$0xff]
    %v98 = vld [vmem:[#allocation5 + $0x38] sm:$0xff]
    %vm99 = vcmask 261120
    %v101 = vsel %vm99, %v89, 0
    %v104 = vsel %vm99, %v90, 0
    %106 = vmatprep.subr.mxu0 0.0
    %107 = vmatpush1.msra.mxu0 0.0
    %108 = vmatprep.subr.mxu0 0.0
    %109 = vmatpush1.msra.mxu0 0.0
    %110 = vmatprep.subr.mxu0 0.0
    %111 = vmatpush1.msra.mxu0 0.0
    %112 = vmatprep.subr.mxu0 0.0
    %113 = vmatpush1.msra.mxu0 0.0
    %114 = vmatprep.subr.mxu0 0.0
    %115 = vmatpush1.msra.mxu0 0.0
    %116 = vmatprep.subr.mxu0 0.0
    %117 = vmatpush1.msra.mxu0 0.0
    %118 = vmatprep.subr.mxu0 0.0
    %119 = vmatpush1.msra.mxu0 0.0
    %120 = vmatprep.subr.mxu0 0.0
    %121 = vmatpush1.msra.mxu0 0.0
    %122 = vmatprep.subr.mxu0 0.0
    %123 = vmatpush1.msra.mxu0 0.0
    %124 = vmatprep.subr.mxu0 0.0
    %125 = vmatpush1.msra.mxu0 0.0
    %126 = vmatprep.subr.mxu0 0.0
    %127 = vmatpush1.msra.mxu0 0.0
    %128 = vmatprep.subr.mxu0 0.0
    %129 = vmatpush1.msra.mxu0 0.0
    %130 = vmatprep.subr.mxu0 %v98
    %131 = vmatpush1.msra.mxu0 %v97
    %132 = vmatprep.subr.mxu0 %v96
    %133 = vmatpush1.msra.mxu0 %v95
    %134 = vmatprep.subr.mxu0 %v94
    %135 = vmatpush1.msra.mxu0 %v93
    %136 = vmatprep.subr.mxu0 %v92
    %137 = vmatpush1.msra.mxu0 %v91
    %138 = vmatprep.subr.mxu0 0.0
    %139 = vmatpush2.msra.mxu0 0.0
    %140 = vmatprep.subr.mxu0 0.0
    %141 = vmatpush2.msra.mxu0 0.0
    %142 = vmatprep.subr.mxu0 0.0
    %143 = vmatpush2.msra.mxu0 0.0
    %144 = vmatprep.subr.mxu0 0.0
    %145 = vmatpush2.msra.mxu0 0.0
    %146 = vmatprep.subr.mxu0 0.0
    %147 = vmatpush2.msra.mxu0 0.0
    %148 = vmatprep.subr.mxu0 0.0
    %149 = vmatpush2.msra.mxu0 0.0
    %150 = vmatprep.subr.mxu0 0.0
    %151 = vmatpush2.msra.mxu0 0.0
    %152 = vmatprep.subr.mxu0 0.0
    %153 = vmatpush2.msra.mxu0 0.0
    %154 = vmatprep.subr.mxu0 0.0
    %155 = vmatpush2.msra.mxu0 0.0
    %156 = vmatprep.subr.mxu0 0.0
    %157 = vmatpush2.msra.mxu0 0.0
    %158 = vmatprep.subr.mxu0 0.0
    %159 = vmatpush2.msra.mxu0 0.0
    %160 = vmatprep.subr.mxu0 0.0
    %161 = vmatpush2.msra.mxu0 0.0
    %162 = vmatprep.subr.mxu0 0.0
    %163 = vmatpush2.msra.mxu0 0.0
    %164 = vmatprep.subr.mxu0 0.0
    %165 = vmatpush2.msra.mxu0 0.0
    %166 = vmatprep.subr.mxu0 0.0
    %167 = vmatpush2.msra.mxu0 0.0
    %168 = vmatprep.subr.mxu0 0.0
    %169 = vmatpush2.msra.mxu0 0.0
    %170 = vmatprep.mubr.f32.mxu0 0.0
    %171 = vmatmul.mubr.f32.gmra.mxu0 %v101
    %v172 = vpop.f32.mrf.mxu0
    %v173 = vadd.f32 0.0, %v172
    %v174 = vpop.f32.mrf.mxu0
    %v175 = vadd.f32 0.0, %v174
    %176 = vmatprep.mubr.f32.mxu0 0.0
    %177 = vmatmul.mubr.f32.gmra.mxu0 %v104
    %v178 = vpop.f32.mrf.mxu0
    %v179 = vadd.f32 0.0, %v178
    %v180 = vpop.f32.mrf.mxu0
    %v181 = vadd.f32 0.0, %v180
    %182 = vdwg.mxu0
    %v183 = vld [vmem:[#allocation8] sm:$0xff]
    %v184 = vld [vmem:[#allocation8 + $0x8] sm:$0xff]
    %v185 = vld [vmem:[#allocation10] sm:$0xff]
    %v186 = vld [vmem:[#allocation10 + $0x8] sm:$0xff]
    %v187 = vmul.f32 %v173, %v183
    %v188 = vmul.f32 %v179, %v184
    %191 = vrot.lane.b32.xlu0 %v185, 32
    %v192 = vpop.permute.xlu0 %191
    %193 = vrot.lane.b32.xlu0 %v186, 32
    %v194 = vpop.permute.xlu0 %193
    %v197 = vmul.f32 %v173, %v192
    %v198 = vmul.f32 %v179, %v194
    %201 = vrot.lane.b32.xlu0 %v197, 96
    %v202 = vpop.permute.xlu0 %201
    %203 = vrot.lane.b32.xlu0 %v198, 96
    %v204 = vpop.permute.xlu0 %203
    %v207 = vadd.f32 %v187, %v202
    %v208 = vadd.f32 %v188, %v204
    %211 = vrot.lane.b32.xlu0 %v183, 64
    %v212 = vpop.permute.xlu0 %211
    %213 = vrot.lane.b32.xlu0 %v184, 64
    %v214 = vpop.permute.xlu0 %213
    %v217 = vmul.f32 %v173, %v212
    %v218 = vmul.f32 %v179, %v214
    %219 = vrot.lane.b32.xlu0 %v185, 96
    %v220 = vpop.permute.xlu0 %219
    %221 = vrot.lane.b32.xlu0 %v186, 96
    %v222 = vpop.permute.xlu0 %221
    %v225 = vmul.f32 %v173, %v220
    %v226 = vmul.f32 %v179, %v222
    %229 = vrot.lane.b32.xlu0 %v225, 96
    %v230 = vpop.permute.xlu0 %229
    %231 = vrot.lane.b32.xlu0 %v226, 96
    %v232 = vpop.permute.xlu0 %231
    %v235 = vadd.f32 %v217, %v230
    %v236 = vadd.f32 %v218, %v232
    %v237 = vlaneseq
    %v238 = vshrl.u32 %v237, 7
    %v239 = vlaneseq
    %v240 = vand.u32 %v239, 127
    %vm241 = vcmp.le.s32.totalorder %v240, %v238
    %v242 = vld [vmem:[#allocation7] sm:$0xff]
    %v243 = vld [vmem:[#allocation7 + $0x8] sm:$0xff]
    %v244 = vld [vmem:[#allocation7 + $0x10] sm:$0xff]
    %v245 = vld [vmem:[#allocation7 + $0x18] sm:$0xff]
    %247 = vrot.lane.b32.xlu0 %v235, 64
    %v248 = vpop.permute.xlu0 %247
    %vm249 = vcmask 64512
    %v251 = vsel %vm249, %v207, 0
    %v253 = vsel %vm249, %v248, 0
    %255 = vmatprep.subr.mxu0 0.0
    %256 = vmatpush1.xpose.msra.mxu0 0.0
    %257 = vmatprep.subr.mxu0 0.0
    %258 = vmatpush1.xpose.msra.mxu0 0.0
    %259 = vmatprep.subr.mxu0 0.0
    %260 = vmatpush1.xpose.msra.mxu0 0.0
    %261 = vmatprep.subr.mxu0 0.0
    %262 = vmatpush1.xpose.msra.mxu0 0.0
    %263 = vmatprep.subr.mxu0 0.0
    %264 = vmatpush1.xpose.msra.mxu0 0.0
    %265 = vmatprep.subr.mxu0 0.0
    %266 = vmatpush1.xpose.msra.mxu0 0.0
    %267 = vmatprep.subr.mxu0 0.0
    %268 = vmatpush1.xpose.msra.mxu0 0.0
    %269 = vmatprep.subr.mxu0 0.0
    %270 = vmatpush1.xpose.msra.mxu0 0.0
    %271 = vmatprep.subr.mxu0 0.0
    %272 = vmatpush1.xpose.msra.mxu0 0.0
    %273 = vmatprep.subr.mxu0 0.0
    %274 = vmatpush1.xpose.msra.mxu0 0.0
    %275 = vmatprep.subr.mxu0 0.0
    %276 = vmatpush1.xpose.msra.mxu0 0.0
    %277 = vmatprep.subr.mxu0 0.0
    %278 = vmatpush1.xpose.msra.mxu0 0.0
    %279 = vmatprep.subr.mxu0 0.0
    %280 = vmatpush1.xpose.msra.mxu0 0.0
    %281 = vmatprep.subr.mxu0 0.0
    %282 = vmatpush1.xpose.msra.mxu0 0.0
    %283 = vmatprep.subr.mxu0 0.0
    %284 = vmatpush1.xpose.msra.mxu0 0.0
    %285 = vmatprep.subr.mxu0 0.0
    %286 = vmatpush1.xpose.msra.mxu0 %v253
    %287 = vmatprep.subr.mxu0 0.0
    %288 = vmatpush2.xpose.msra.mxu0 0.0
    %289 = vmatprep.subr.mxu0 0.0
    %290 = vmatpush2.xpose.msra.mxu0 0.0
    %291 = vmatprep.subr.mxu0 0.0
    %292 = vmatpush2.xpose.msra.mxu0 0.0
    %293 = vmatprep.subr.mxu0 0.0
    %294 = vmatpush2.xpose.msra.mxu0 0.0
    %295 = vmatprep.subr.mxu0 0.0
    %296 = vmatpush2.xpose.msra.mxu0 0.0
    %297 = vmatprep.subr.mxu0 0.0
    %298 = vmatpush2.xpose.msra.mxu0 0.0
    %299 = vmatprep.subr.mxu0 0.0
    %300 = vmatpush2.xpose.msra.mxu0 0.0
    %301 = vmatprep.subr.mxu0 0.0
    %302 = vmatpush2.xpose.msra.mxu0 0.0
    %303 = vmatprep.subr.mxu0 0.0
    %304 = vmatpush2.xpose.msra.mxu0 0.0
    %305 = vmatprep.subr.mxu0 0.0
    %306 = vmatpush2.xpose.msra.mxu0 0.0
    %307 = vmatprep.subr.mxu0 0.0
    %308 = vmatpush2.xpose.msra.mxu0 0.0
    %309 = vmatprep.subr.mxu0 0.0
    %310 = vmatpush2.xpose.msra.mxu0 0.0
    %311 = vmatprep.subr.mxu0 0.0
    %312 = vmatpush2.xpose.msra.mxu0 0.0
    %313 = vmatprep.subr.mxu0 0.0
    %314 = vmatpush2.xpose.msra.mxu0 0.0
    %315 = vmatprep.subr.mxu0 0.0
    %316 = vmatpush2.xpose.msra.mxu0 0.0
    %317 = vmatprep.subr.mxu0 0.0
    %318 = vmatpush2.xpose.msra.mxu0 0.0
    %319 = vmatprep.mubr.f32.mxu0 0.0
    %320 = vmatmul.mubr.f32.gmra.mxu0 %v251
    %v321 = vpop.f32.mrf.mxu0
    %v322 = vadd.f32 0.0, %v321
    %v323 = vpop.f32.mrf.mxu0
    %324 = vdwg.mxu0
    %326 = vrot.lane.b32.xlu0 %v236, 64
    %v327 = vpop.permute.xlu0 %326
    %v329 = vsel %vm249, %v208, 0
    %v331 = vsel %vm249, %v327, 0
    %333 = vmatprep.subr.mxu0 0.0
    %334 = vmatpush1.xpose.msra.mxu0 0.0
    %335 = vmatprep.subr.mxu0 0.0
    %336 = vmatpush1.xpose.msra.mxu0 0.0
    %337 = vmatprep.subr.mxu0 0.0
    %338 = vmatpush1.xpose.msra.mxu0 0.0
    %339 = vmatprep.subr.mxu0 0.0
    %340 = vmatpush1.xpose.msra.mxu0 0.0
    %341 = vmatprep.subr.mxu0 0.0
    %342 = vmatpush1.xpose.msra.mxu0 0.0
    %343 = vmatprep.subr.mxu0 0.0
    %344 = vmatpush1.xpose.msra.mxu0 0.0
    %345 = vmatprep.subr.mxu0 0.0
    %346 = vmatpush1.xpose.msra.mxu0 0.0
    %347 = vmatprep.subr.mxu0 0.0
    %348 = vmatpush1.xpose.msra.mxu0 0.0
    %349 = vmatprep.subr.mxu0 0.0
    %350 = vmatpush1.xpose.msra.mxu0 0.0
    %351 = vmatprep.subr.mxu0 0.0
    %352 = vmatpush1.xpose.msra.mxu0 0.0
    %353 = vmatprep.subr.mxu0 0.0
    %354 = vmatpush1.xpose.msra.mxu0 0.0
    %355 = vmatprep.subr.mxu0 0.0
    %356 = vmatpush1.xpose.msra.mxu0 0.0
    %357 = vmatprep.subr.mxu0 0.0
    %358 = vmatpush1.xpose.msra.mxu0 0.0
    %359 = vmatprep.subr.mxu0 0.0
    %360 = vmatpush1.xpose.msra.mxu0 0.0
    %361 = vmatprep.subr.mxu0 0.0
    %362 = vmatpush1.xpose.msra.mxu0 0.0
    %363 = vmatprep.subr.mxu0 0.0
    %364 = vmatpush1.xpose.msra.mxu0 %v331
    %365 = vmatprep.subr.mxu0 0.0
    %366 = vmatpush2.xpose.msra.mxu0 0.0
    %367 = vmatprep.subr.mxu0 0.0
    %368 = vmatpush2.xpose.msra.mxu0 0.0
    %369 = vmatprep.subr.mxu0 0.0
    %370 = vmatpush2.xpose.msra.mxu0 0.0
    %371 = vmatprep.subr.mxu0 0.0
    %372 = vmatpush2.xpose.msra.mxu0 0.0
    %373 = vmatprep.subr.mxu0 0.0
    %374 = vmatpush2.xpose.msra.mxu0 0.0
    %375 = vmatprep.subr.mxu0 0.0
    %376 = vmatpush2.xpose.msra.mxu0 0.0
    %377 = vmatprep.subr.mxu0 0.0
    %378 = vmatpush2.xpose.msra.mxu0 0.0
    %379 = vmatprep.subr.mxu0 0.0
    %380 = vmatpush2.xpose.msra.mxu0 0.0
    %381 = vmatprep.subr.mxu0 0.0
    %382 = vmatpush2.xpose.msra.mxu0 0.0
    %383 = vmatprep.subr.mxu0 0.0
    %384 = vmatpush2.xpose.msra.mxu0 0.0
    %385 = vmatprep.subr.mxu0 0.0
    %386 = vmatpush2.xpose.msra.mxu0 0.0
    %387 = vmatprep.subr.mxu0 0.0
    %388 = vmatpush2.xpose.msra.mxu0 0.0
    %389 = vmatprep.subr.mxu0 0.0
    %390 = vmatpush2.xpose.msra.mxu0 0.0
    %391 = vmatprep.subr.mxu0 0.0
    %392 = vmatpush2.xpose.msra.mxu0 0.0
    %393 = vmatprep.subr.mxu0 0.0
    %394 = vmatpush2.xpose.msra.mxu0 0.0
    %395 = vmatprep.subr.mxu0 0.0
    %396 = vmatpush2.xpose.msra.mxu0 0.0
    %397 = vmatprep.mubr.f32.mxu0 0.0
    %398 = vmatmul.mubr.f32.gmra.mxu0 %v329
    %v399 = vpop.f32.mrf.mxu0
    %v400 = vadd.f32 0.0, %v399
    %v401 = vpop.f32.mrf.mxu0
    %402 = vdwg.mxu0
    %v403 = vsel %vm241, %v322, -1e+30
    %v404 = vsel %vm241, %v400, -1e+30
    %v405 = vsel %vm249, %v403, -inf
    %406 = vmax.xlane.f32.xlu0 %v405
    %v407 = vpop.xlane.xlu0 %406
    %v408 = vsel %vm249, %v404, -inf
    %409 = vmax.xlane.f32.xlu0 %v408
    %v410 = vpop.xlane.xlu0 %409
    %v411 = vsub.f32 %v403, %v407
    %v412 = vsub.f32 %v404, %v410
    %v413 = vmul.f32 %v411, 1.442695
    %v414 = vpow.pop %v413
    %v415 = vmul.f32 %v412, 1.442695
    %v416 = vpow.pop %v415
    %v417 = vsel %vm249, %v414, 0.0
    %418 = vadd.xlane.f32.xlu0 %v417
    %v419 = vpop.xlane.xlu0 %418
    %v420 = vsel %vm249, %v416, 0.0
    %421 = vadd.xlane.f32.xlu0 %v420
    %v422 = vpop.xlane.xlu0 %421
    %v423 = vrcp.pop %v419
    %v424 = vrcp.pop %v422
    %v425 = vmul.f32 %v414, %v423
    %v426 = vmul.f32 %v416, %v424
    %v428 = vsel %vm249, %v425, 0
    %430 = vmatprep.subr.mxu0 0.0
    %431 = vmatpush1.msra.mxu0 0.0
    %432 = vmatprep.subr.mxu0 0.0
    %433 = vmatpush1.msra.mxu0 0.0
    %434 = vmatprep.subr.mxu0 0.0
    %435 = vmatpush1.msra.mxu0 0.0
    %436 = vmatprep.subr.mxu0 0.0
    %437 = vmatpush1.msra.mxu0 0.0
    %438 = vmatprep.subr.mxu0 0.0
    %439 = vmatpush1.msra.mxu0 0.0
    %440 = vmatprep.subr.mxu0 0.0
    %441 = vmatpush1.msra.mxu0 0.0
    %442 = vmatprep.subr.mxu0 0.0
    %443 = vmatpush1.msra.mxu0 0.0
    %444 = vmatprep.subr.mxu0 0.0
    %445 = vmatpush1.msra.mxu0 0.0
    %446 = vmatprep.subr.mxu0 0.0
    %447 = vmatpush1.msra.mxu0 0.0
    %448 = vmatprep.subr.mxu0 0.0
    %449 = vmatpush1.msra.mxu0 0.0
    %450 = vmatprep.subr.mxu0 0.0
    %451 = vmatpush1.msra.mxu0 0.0
    %452 = vmatprep.subr.mxu0 0.0
    %453 = vmatpush1.msra.mxu0 0.0
    %454 = vmatprep.subr.mxu0 0.0
    %455 = vmatpush1.msra.mxu0 0.0
    %456 = vmatprep.subr.mxu0 0.0
    %457 = vmatpush1.msra.mxu0 0.0
    %458 = vmatprep.subr.mxu0 0.0
    %459 = vmatpush1.msra.mxu0 0.0
    %460 = vmatprep.subr.mxu0 0.0
    %461 = vmatpush1.msra.mxu0 %v175
    %462 = vmatprep.subr.mxu0 0.0
    %463 = vmatpush2.msra.mxu0 0.0
    %464 = vmatprep.subr.mxu0 0.0
    %465 = vmatpush2.msra.mxu0 0.0
    %466 = vmatprep.subr.mxu0 0.0
    %467 = vmatpush2.msra.mxu0 0.0
    %468 = vmatprep.subr.mxu0 0.0
    %469 = vmatpush2.msra.mxu0 0.0
    %470 = vmatprep.subr.mxu0 0.0
    %471 = vmatpush2.msra.mxu0 0.0
    %472 = vmatprep.subr.mxu0 0.0
    %473 = vmatpush2.msra.mxu0 0.0
    %474 = vmatprep.subr.mxu0 0.0
    %475 = vmatpush2.msra.mxu0 0.0
    %476 = vmatprep.subr.mxu0 0.0
    %477 = vmatpush2.msra.mxu0 0.0
    %478 = vmatprep.subr.mxu0 0.0
    %479 = vmatpush2.msra.mxu0 0.0
    %480 = vmatprep.subr.mxu0 0.0
    %481 = vmatpush2.msra.mxu0 0.0
    %482 = vmatprep.subr.mxu0 0.0
    %483 = vmatpush2.msra.mxu0 0.0
    %484 = vmatprep.subr.mxu0 0.0
    %485 = vmatpush2.msra.mxu0 0.0
    %486 = vmatprep.subr.mxu0 0.0
    %487 = vmatpush2.msra.mxu0 0.0
    %488 = vmatprep.subr.mxu0 0.0
    %489 = vmatpush2.msra.mxu0 0.0
    %490 = vmatprep.subr.mxu0 0.0
    %491 = vmatpush2.msra.mxu0 0.0
    %492 = vmatprep.subr.mxu0 0.0
    %493 = vmatpush2.msra.mxu0 0.0
    %494 = vmatprep.mubr.f32.mxu0 0.0
    %495 = vmatmul.mubr.f32.gmra.mxu0 %v428
    %v496 = vpop.f32.mrf.mxu0
    %v497 = vadd.f32 0.0, %v496
    %v498 = vpop.f32.mrf.mxu0
    %499 = vdwg.mxu0
    %v501 = vsel %vm249, %v426, 0
    %503 = vmatprep.subr.mxu0 0.0
    %504 = vmatpush1.msra.mxu0 0.0
    %505 = vmatprep.subr.mxu0 0.0
    %506 = vmatpush1.msra.mxu0 0.0
    %507 = vmatprep.subr.mxu0 0.0
    %508 = vmatpush1.msra.mxu0 0.0
    %509 = vmatprep.subr.mxu0 0.0
    %510 = vmatpush1.msra.mxu0 0.0
    %511 = vmatprep.subr.mxu0 0.0
    %512 = vmatpush1.msra.mxu0 0.0
    %513 = vmatprep.subr.mxu0 0.0
    %514 = vmatpush1.msra.mxu0 0.0
    %515 = vmatprep.subr.mxu0 0.0
    %516 = vmatpush1.msra.mxu0 0.0
    %517 = vmatprep.subr.mxu0 0.0
    %518 = vmatpush1.msra.mxu0 0.0
    %519 = vmatprep.subr.mxu0 0.0
    %520 = vmatpush1.msra.mxu0 0.0
    %521 = vmatprep.subr.mxu0 0.0
    %522 = vmatpush1.msra.mxu0 0.0
    %523 = vmatprep.subr.mxu0 0.0
    %524 = vmatpush1.msra.mxu0 0.0
    %525 = vmatprep.subr.mxu0 0.0
    %526 = vmatpush1.msra.mxu0 0.0
    %527 = vmatprep.subr.mxu0 0.0
    %528 = vmatpush1.msra.mxu0 0.0
    %529 = vmatprep.subr.mxu0 0.0
    %530 = vmatpush1.msra.mxu0 0.0
    %531 = vmatprep.subr.mxu0 0.0
    %532 = vmatpush1.msra.mxu0 0.0
    %533 = vmatprep.subr.mxu0 0.0
    %534 = vmatpush1.msra.mxu0 %v181
    %535 = vmatprep.subr.mxu0 0.0
    %536 = vmatpush2.msra.mxu0 0.0
    %537 = vmatprep.subr.mxu0 0.0
    %538 = vmatpush2.msra.mxu0 0.0
    %539 = vmatprep.subr.mxu0 0.0
    %540 = vmatpush2.msra.mxu0 0.0
    %541 = vmatprep.subr.mxu0 0.0
    %542 = vmatpush2.msra.mxu0 0.0
    %543 = vmatprep.subr.mxu0 0.0
    %544 = vmatpush2.msra.mxu0 0.0
    %545 = vmatprep.subr.mxu0 0.0
    %546 = vmatpush2.msra.mxu0 0.0
    %547 = vmatprep.subr.mxu0 0.0
    %548 = vmatpush2.msra.mxu0 0.0
    %549 = vmatprep.subr.mxu0 0.0
    %550 = vmatpush2.msra.mxu0 0.0
    %551 = vmatprep.subr.mxu0 0.0
    %552 = vmatpush2.msra.mxu0 0.0
    %553 = vmatprep.subr.mxu0 0.0
    %554 = vmatpush2.msra.mxu0 0.0
    %555 = vmatprep.subr.mxu0 0.0
    %556 = vmatpush2.msra.mxu0 0.0
    %557 = vmatprep.subr.mxu0 0.0
    %558 = vmatpush2.msra.mxu0 0.0
    %559 = vmatprep.subr.mxu0 0.0
    %560 = vmatpush2.msra.mxu0 0.0
    %561 = vmatprep.subr.mxu0 0.0
    %562 = vmatpush2.msra.mxu0 0.0
    %563 = vmatprep.subr.mxu0 0.0
    %564 = vmatpush2.msra.mxu0 0.0
    %565 = vmatprep.subr.mxu0 0.0
    %566 = vmatpush2.msra.mxu0 0.0
    %567 = vmatprep.mubr.f32.mxu0 0.0
    %568 = vmatmul.mubr.f32.gmra.mxu0 %v501
    %v569 = vpop.f32.mrf.mxu0
    %v570 = vadd.f32 0.0, %v569
    %v571 = vpop.f32.mrf.mxu0
    %572 = vdwg.mxu0
    %573 = vrot.lane.b32.xlu0 %v207, 120
    %v574 = vpop.permute.xlu0 %573
    %575 = vrot.lane.b32.xlu0 %v235, 56
    %v576 = vpop.permute.xlu0 %575
    %v577 = vsel %vm249, %v574, 0
    %v579 = vsel %vm249, %v576, 0
    %581 = vmatprep.subr.mxu0 0.0
    %582 = vmatpush1.xpose.msra.mxu0 0.0
    %583 = vmatprep.subr.mxu0 0.0
    %584 = vmatpush1.xpose.msra.mxu0 0.0
    %585 = vmatprep.subr.mxu0 0.0
    %586 = vmatpush1.xpose.msra.mxu0 0.0
    %587 = vmatprep.subr.mxu0 0.0
    %588 = vmatpush1.xpose.msra.mxu0 0.0
    %589 = vmatprep.subr.mxu0 0.0
    %590 = vmatpush1.xpose.msra.mxu0 0.0
    %591 = vmatprep.subr.mxu0 0.0
    %592 = vmatpush1.xpose.msra.mxu0 0.0
    %593 = vmatprep.subr.mxu0 0.0
    %594 = vmatpush1.xpose.msra.mxu0 0.0
    %595 = vmatprep.subr.mxu0 0.0
    %596 = vmatpush1.xpose.msra.mxu0 0.0
    %597 = vmatprep.subr.mxu0 0.0
    %598 = vmatpush1.xpose.msra.mxu0 0.0
    %599 = vmatprep.subr.mxu0 0.0
    %600 = vmatpush1.xpose.msra.mxu0 0.0
    %601 = vmatprep.subr.mxu0 0.0
    %602 = vmatpush1.xpose.msra.mxu0 0.0
    %603 = vmatprep.subr.mxu0 0.0
    %604 = vmatpush1.xpose.msra.mxu0 0.0
    %605 = vmatprep.subr.mxu0 0.0
    %606 = vmatpush1.xpose.msra.mxu0 0.0
    %607 = vmatprep.subr.mxu0 0.0
    %608 = vmatpush1.xpose.msra.mxu0 0.0
    %609 = vmatprep.subr.mxu0 0.0
    %610 = vmatpush1.xpose.msra.mxu0 0.0
    %611 = vmatprep.subr.mxu0 0.0
    %612 = vmatpush1.xpose.msra.mxu0 %v579
    %613 = vmatprep.subr.mxu0 0.0
    %614 = vmatpush2.xpose.msra.mxu0 0.0
    %615 = vmatprep.subr.mxu0 0.0
    %616 = vmatpush2.xpose.msra.mxu0 0.0
    %617 = vmatprep.subr.mxu0 0.0
    %618 = vmatpush2.xpose.msra.mxu0 0.0
    %619 = vmatprep.subr.mxu0 0.0
    %620 = vmatpush2.xpose.msra.mxu0 0.0
    %621 = vmatprep.subr.mxu0 0.0
    %622 = vmatpush2.xpose.msra.mxu0 0.0
    %623 = vmatprep.subr.mxu0 0.0
    %624 = vmatpush2.xpose.msra.mxu0 0.0
    %625 = vmatprep.subr.mxu0 0.0
    %626 = vmatpush2.xpose.msra.mxu0 0.0
    %627 = vmatprep.subr.mxu0 0.0
    %628 = vmatpush2.xpose.msra.mxu0 0.0
    %629 = vmatprep.subr.mxu0 0.0
    %630 = vmatpush2.xpose.msra.mxu0 0.0
    %631 = vmatprep.subr.mxu0 0.0
    %632 = vmatpush2.xpose.msra.mxu0 0.0
    %633 = vmatprep.subr.mxu0 0.0
    %634 = vmatpush2.xpose.msra.mxu0 0.0
    %635 = vmatprep.subr.mxu0 0.0
    %636 = vmatpush2.xpose.msra.mxu0 0.0
    %637 = vmatprep.subr.mxu0 0.0
    %638 = vmatpush2.xpose.msra.mxu0 0.0
    %639 = vmatprep.subr.mxu0 0.0
    %640 = vmatpush2.xpose.msra.mxu0 0.0
    %641 = vmatprep.subr.mxu0 0.0
    %642 = vmatpush2.xpose.msra.mxu0 0.0
    %643 = vmatprep.subr.mxu0 0.0
    %644 = vmatpush2.xpose.msra.mxu0 0.0
    %645 = vmatprep.mubr.f32.mxu0 0.0
    %646 = vmatmul.mubr.f32.gmra.mxu0 %v577
    %v647 = vpop.f32.mrf.mxu0
    %v648 = vadd.f32 0.0, %v647
    %v649 = vpop.f32.mrf.mxu0
    %650 = vdwg.mxu0
    %651 = vrot.lane.b32.xlu0 %v208, 120
    %v652 = vpop.permute.xlu0 %651
    %653 = vrot.lane.b32.xlu0 %v236, 56
    %v654 = vpop.permute.xlu0 %653
    %v655 = vsel %vm249, %v652, 0
    %v657 = vsel %vm249, %v654, 0
    %659 = vmatprep.subr.mxu0 0.0
    %660 = vmatpush1.xpose.msra.mxu0 0.0
    %661 = vmatprep.subr.mxu0 0.0
    %662 = vmatpush1.xpose.msra.mxu0 0.0
    %663 = vmatprep.subr.mxu0 0.0
    %664 = vmatpush1.xpose.msra.mxu0 0.0
    %665 = vmatprep.subr.mxu0 0.0
    %666 = vmatpush1.xpose.msra.mxu0 0.0
    %667 = vmatprep.subr.mxu0 0.0
    %668 = vmatpush1.xpose.msra.mxu0 0.0
    %669 = vmatprep.subr.mxu0 0.0
    %670 = vmatpush1.xpose.msra.mxu0 0.0
    %671 = vmatprep.subr.mxu0 0.0
    %672 = vmatpush1.xpose.msra.mxu0 0.0
    %673 = vmatprep.subr.mxu0 0.0
    %674 = vmatpush1.xpose.msra.mxu0 0.0
    %675 = vmatprep.subr.mxu0 0.0
    %676 = vmatpush1.xpose.msra.mxu0 0.0
    %677 = vmatprep.subr.mxu0 0.0
    %678 = vmatpush1.xpose.msra.mxu0 0.0
    %679 = vmatprep.subr.mxu0 0.0
    %680 = vmatpush1.xpose.msra.mxu0 0.0
    %681 = vmatprep.subr.mxu0 0.0
    %682 = vmatpush1.xpose.msra.mxu0 0.0
    %683 = vmatprep.subr.mxu0 0.0
    %684 = vmatpush1.xpose.msra.mxu0 0.0
    %685 = vmatprep.subr.mxu0 0.0
    %686 = vmatpush1.xpose.msra.mxu0 0.0
    %687 = vmatprep.subr.mxu0 0.0
    %688 = vmatpush1.xpose.msra.mxu0 0.0
    %689 = vmatprep.subr.mxu0 0.0
    %690 = vmatpush1.xpose.msra.mxu0 %v657
    %691 = vmatprep.subr.mxu0 0.0
    %692 = vmatpush2.xpose.msra.mxu0 0.0
    %693 = vmatprep.subr.mxu0 0.0
    %694 = vmatpush2.xpose.msra.mxu0 0.0
    %695 = vmatprep.subr.mxu0 0.0
    %696 = vmatpush2.xpose.msra.mxu0 0.0
    %697 = vmatprep.subr.mxu0 0.0
    %698 = vmatpush2.xpose.msra.mxu0 0.0
    %699 = vmatprep.subr.mxu0 0.0
    %700 = vmatpush2.xpose.msra.mxu0 0.0
    %701 = vmatprep.subr.mxu0 0.0
    %702 = vmatpush2.xpose.msra.mxu0 0.0
    %703 = vmatprep.subr.mxu0 0.0
    %704 = vmatpush2.xpose.msra.mxu0 0.0
    %705 = vmatprep.subr.mxu0 0.0
    %706 = vmatpush2.xpose.msra.mxu0 0.0
    %707 = vmatprep.subr.mxu0 0.0
    %708 = vmatpush2.xpose.msra.mxu0 0.0
    %709 = vmatprep.subr.mxu0 0.0
    %710 = vmatpush2.xpose.msra.mxu0 0.0
    %711 = vmatprep.subr.mxu0 0.0
    %712 = vmatpush2.xpose.msra.mxu0 0.0
    %713 = vmatprep.subr.mxu0 0.0
    %714 = vmatpush2.xpose.msra.mxu0 0.0
    %715 = vmatprep.subr.mxu0 0.0
    %716 = vmatpush2.xpose.msra.mxu0 0.0
    %717 = vmatprep.subr.mxu0 0.0
    %718 = vmatpush2.xpose.msra.mxu0 0.0
    %719 = vmatprep.subr.mxu0 0.0
    %720 = vmatpush2.xpose.msra.mxu0 0.0
    %721 = vmatprep.subr.mxu0 0.0
    %722 = vmatpush2.xpose.msra.mxu0 0.0
    %723 = vmatprep.mubr.f32.mxu0 0.0
    %724 = vmatmul.mubr.f32.gmra.mxu0 %v655
    %v725 = vpop.f32.mrf.mxu0
    %v726 = vadd.f32 0.0, %v725
    %v727 = vpop.f32.mrf.mxu0
    %728 = vdwg.mxu0
    %v729 = vsel %vm241, %v648, -1e+30
    %v730 = vsel %vm241, %v726, -1e+30
    %v731 = vsel %vm249, %v729, -inf
    %732 = vmax.xlane.f32.xlu0 %v731
    %v733 = vpop.xlane.xlu0 %732
    %v734 = vsel %vm249, %v730, -inf
    %735 = vmax.xlane.f32.xlu0 %v734
    %v736 = vpop.xlane.xlu0 %735
    %v737 = vsub.f32 %v729, %v733
    %v738 = vsub.f32 %v730, %v736
    %v739 = vmul.f32 %v737, 1.442695
    %v740 = vpow.pop %v739
    %v741 = vmul.f32 %v738, 1.442695
    %v742 = vpow.pop %v741
    %v743 = vsel %vm249, %v740, 0.0
    %744 = vadd.xlane.f32.xlu0 %v743
    %v745 = vpop.xlane.xlu0 %744
    %v746 = vsel %vm249, %v742, 0.0
    %747 = vadd.xlane.f32.xlu0 %v746
    %v748 = vpop.xlane.xlu0 %747
    %v749 = vrcp.pop %v745
    %v750 = vrcp.pop %v748
    %v751 = vmul.f32 %v740, %v749
    %v752 = vmul.f32 %v742, %v750
    %754 = vrot.lane.b32.xlu0 %v175, 120
    %v755 = vpop.permute.xlu0 %754
    %v758 = vsel %vm249, %v751, 0
    %760 = vmatprep.subr.mxu0 0.0
    %761 = vmatpush1.msra.mxu0 0.0
    %762 = vmatprep.subr.mxu0 0.0
    %763 = vmatpush1.msra.mxu0 0.0
    %764 = vmatprep.subr.mxu0 0.0
    %765 = vmatpush1.msra.mxu0 0.0
    %766 = vmatprep.subr.mxu0 0.0
    %767 = vmatpush1.msra.mxu0 0.0
    %768 = vmatprep.subr.mxu0 0.0
    %769 = vmatpush1.msra.mxu0 0.0
    %770 = vmatprep.subr.mxu0 0.0
    %771 = vmatpush1.msra.mxu0 0.0
    %772 = vmatprep.subr.mxu0 0.0
    %773 = vmatpush1.msra.mxu0 0.0
    %774 = vmatprep.subr.mxu0 0.0
    %775 = vmatpush1.msra.mxu0 0.0
    %776 = vmatprep.subr.mxu0 0.0
    %777 = vmatpush1.msra.mxu0 0.0
    %778 = vmatprep.subr.mxu0 0.0
    %779 = vmatpush1.msra.mxu0 0.0
    %780 = vmatprep.subr.mxu0 0.0
    %781 = vmatpush1.msra.mxu0 0.0
    %782 = vmatprep.subr.mxu0 0.0
    %783 = vmatpush1.msra.mxu0 0.0
    %784 = vmatprep.subr.mxu0 0.0
    %785 = vmatpush1.msra.mxu0 0.0
    %786 = vmatprep.subr.mxu0 0.0
    %787 = vmatpush1.msra.mxu0 0.0
    %788 = vmatprep.subr.mxu0 0.0
    %789 = vmatpush1.msra.mxu0 0.0
    %790 = vmatprep.subr.mxu0 0.0
    %791 = vmatpush1.msra.mxu0 %v755
    %792 = vmatprep.subr.mxu0 0.0
    %793 = vmatpush2.msra.mxu0 0.0
    %794 = vmatprep.subr.mxu0 0.0
    %795 = vmatpush2.msra.mxu0 0.0
    %796 = vmatprep.subr.mxu0 0.0
    %797 = vmatpush2.msra.mxu0 0.0
    %798 = vmatprep.subr.mxu0 0.0
    %799 = vmatpush2.msra.mxu0 0.0
    %800 = vmatprep.subr.mxu0 0.0
    %801 = vmatpush2.msra.mxu0 0.0
    %802 = vmatprep.subr.mxu0 0.0
    %803 = vmatpush2.msra.mxu0 0.0
    %804 = vmatprep.subr.mxu0 0.0
    %805 = vmatpush2.msra.mxu0 0.0
    %806 = vmatprep.subr.mxu0 0.0
    %807 = vmatpush2.msra.mxu0 0.0
    %808 = vmatprep.subr.mxu0 0.0
    %809 = vmatpush2.msra.mxu0 0.0
    %810 = vmatprep.subr.mxu0 0.0
    %811 = vmatpush2.msra.mxu0 0.0
    %812 = vmatprep.subr.mxu0 0.0
    %813 = vmatpush2.msra.mxu0 0.0
    %814 = vmatprep.subr.mxu0 0.0
    %815 = vmatpush2.msra.mxu0 0.0
    %816 = vmatprep.subr.mxu0 0.0
    %817 = vmatpush2.msra.mxu0 0.0
    %818 = vmatprep.subr.mxu0 0.0
    %819 = vmatpush2.msra.mxu0 0.0
    %820 = vmatprep.subr.mxu0 0.0
    %821 = vmatpush2.msra.mxu0 0.0
    %822 = vmatprep.subr.mxu0 0.0
    %823 = vmatpush2.msra.mxu0 0.0
    %824 = vmatprep.mubr.f32.mxu0 0.0
    %825 = vmatmul.mubr.f32.gmra.mxu0 %v758
    %v826 = vpop.f32.mrf.mxu0
    %v827 = vadd.f32 0.0, %v826
    %v828 = vpop.f32.mrf.mxu0
    %829 = vdwg.mxu0
    %831 = vrot.lane.b32.xlu0 %v181, 120
    %v832 = vpop.permute.xlu0 %831
    %v835 = vsel %vm249, %v752, 0
    %837 = vmatprep.subr.mxu0 0.0
    %838 = vmatpush1.msra.mxu0 0.0
    %839 = vmatprep.subr.mxu0 0.0
    %840 = vmatpush1.msra.mxu0 0.0
    %841 = vmatprep.subr.mxu0 0.0
    %842 = vmatpush1.msra.mxu0 0.0
    %843 = vmatprep.subr.mxu0 0.0
    %844 = vmatpush1.msra.mxu0 0.0
    %845 = vmatprep.subr.mxu0 0.0
    %846 = vmatpush1.msra.mxu0 0.0
    %847 = vmatprep.subr.mxu0 0.0
    %848 = vmatpush1.msra.mxu0 0.0
    %849 = vmatprep.subr.mxu0 0.0
    %850 = vmatpush1.msra.mxu0 0.0
    %851 = vmatprep.subr.mxu0 0.0
    %852 = vmatpush1.msra.mxu0 0.0
    %853 = vmatprep.subr.mxu0 0.0
    %854 = vmatpush1.msra.mxu0 0.0
    %855 = vmatprep.subr.mxu0 0.0
    %856 = vmatpush1.msra.mxu0 0.0
    %857 = vmatprep.subr.mxu0 0.0
    %858 = vmatpush1.msra.mxu0 0.0
    %859 = vmatprep.subr.mxu0 0.0
    %860 = vmatpush1.msra.mxu0 0.0
    %861 = vmatprep.subr.mxu0 0.0
    %862 = vmatpush1.msra.mxu0 0.0
    %863 = vmatprep.subr.mxu0 0.0
    %864 = vmatpush1.msra.mxu0 0.0
    %865 = vmatprep.subr.mxu0 0.0
    %866 = vmatpush1.msra.mxu0 0.0
    %867 = vmatprep.subr.mxu0 0.0
    %868 = vmatpush1.msra.mxu0 %v832
    %869 = vmatprep.subr.mxu0 0.0
    %870 = vmatpush2.msra.mxu0 0.0
    %871 = vmatprep.subr.mxu0 0.0
    %872 = vmatpush2.msra.mxu0 0.0
    %873 = vmatprep.subr.mxu0 0.0
    %874 = vmatpush2.msra.mxu0 0.0
    %875 = vmatprep.subr.mxu0 0.0
    %876 = vmatpush2.msra.mxu0 0.0
    %877 = vmatprep.subr.mxu0 0.0
    %878 = vmatpush2.msra.mxu0 0.0
    %879 = vmatprep.subr.mxu0 0.0
    %880 = vmatpush2.msra.mxu0 0.0
    %881 = vmatprep.subr.mxu0 0.0
    %882 = vmatpush2.msra.mxu0 0.0
    %883 = vmatprep.subr.mxu0 0.0
    %884 = vmatpush2.msra.mxu0 0.0
    %885 = vmatprep.subr.mxu0 0.0
    %886 = vmatpush2.msra.mxu0 0.0
    %887 = vmatprep.subr.mxu0 0.0
    %888 = vmatpush2.msra.mxu0 0.0
    %889 = vmatprep.subr.mxu0 0.0
    %890 = vmatpush2.msra.mxu0 0.0
    %891 = vmatprep.subr.mxu0 0.0
    %892 = vmatpush2.msra.mxu0 0.0
    %893 = vmatprep.subr.mxu0 0.0
    %894 = vmatpush2.msra.mxu0 0.0
    %895 = vmatprep.subr.mxu0 0.0
    %896 = vmatpush2.msra.mxu0 0.0
    %897 = vmatprep.subr.mxu0 0.0
    %898 = vmatpush2.msra.mxu0 0.0
    %899 = vmatprep.subr.mxu0 0.0
    %900 = vmatpush2.msra.mxu0 0.0
    %901 = vmatprep.mubr.f32.mxu0 0.0
    %902 = vmatmul.mubr.f32.gmra.mxu0 %v835
    %v903 = vpop.f32.mrf.mxu0
    %v904 = vadd.f32 0.0, %v903
    %v905 = vpop.f32.mrf.mxu0
    %906 = vdwg.mxu0
    %v908 = vsel %vm249, %v827, 0
    %v911 = vsel %vm249, %v904, 0
    %913 = vmatprep.subr.mxu0 0.0
    %914 = vmatpush1.msra.mxu0 0.0
    %915 = vmatprep.subr.mxu0 0.0
    %916 = vmatpush1.msra.mxu0 0.0
    %917 = vmatprep.subr.mxu0 0.0
    %918 = vmatpush1.msra.mxu0 0.0
    %919 = vmatprep.subr.mxu0 0.0
    %920 = vmatpush1.msra.mxu0 0.0
    %921 = vmatprep.subr.mxu0 0.0
    %922 = vmatpush1.msra.mxu0 0.0
    %923 = vmatprep.subr.mxu0 0.0
    %924 = vmatpush1.msra.mxu0 0.0
    %925 = vmatprep.subr.mxu0 0.0
    %926 = vmatpush1.msra.mxu0 0.0
    %927 = vmatprep.subr.mxu0 0.0
    %928 = vmatpush1.msra.mxu0 0.0
    %929 = vmatprep.subr.mxu0 0.0
    %930 = vmatpush1.msra.mxu0 0.0
    %931 = vmatprep.subr.mxu0 0.0
    %932 = vmatpush1.msra.mxu0 0.0
    %933 = vmatprep.subr.mxu0 0.0
    %934 = vmatpush1.msra.mxu0 0.0
    %935 = vmatprep.subr.mxu0 0.0
    %936 = vmatpush1.msra.mxu0 0.0
    %937 = vmatprep.subr.mxu0 0.0
    %938 = vmatpush1.msra.mxu0 0.0
    %939 = vmatprep.subr.mxu0 0.0
    %940 = vmatpush1.msra.mxu0 0.0
    %941 = vmatprep.subr.mxu0 0.0
    %942 = vmatpush1.msra.mxu0 0.0
    %943 = vmatprep.subr.mxu0 0.0
    %944 = vmatpush1.msra.mxu0 %v243
    %945 = vmatprep.subr.mxu0 0.0
    %946 = vmatpush2.msra.mxu0 0.0
    %947 = vmatprep.subr.mxu0 0.0
    %948 = vmatpush2.msra.mxu0 0.0
    %949 = vmatprep.subr.mxu0 0.0
    %950 = vmatpush2.msra.mxu0 0.0
    %951 = vmatprep.subr.mxu0 0.0
    %952 = vmatpush2.msra.mxu0 0.0
    %953 = vmatprep.subr.mxu0 0.0
    %954 = vmatpush2.msra.mxu0 0.0
    %955 = vmatprep.subr.mxu0 0.0
    %956 = vmatpush2.msra.mxu0 0.0
    %957 = vmatprep.subr.mxu0 0.0
    %958 = vmatpush2.msra.mxu0 0.0
    %959 = vmatprep.subr.mxu0 0.0
    %960 = vmatpush2.msra.mxu0 0.0
    %961 = vmatprep.subr.mxu0 0.0
    %962 = vmatpush2.msra.mxu0 0.0
    %963 = vmatprep.subr.mxu0 0.0
    %964 = vmatpush2.msra.mxu0 0.0
    %965 = vmatprep.subr.mxu0 0.0
    %966 = vmatpush2.msra.mxu0 0.0
    %967 = vmatprep.subr.mxu0 0.0
    %968 = vmatpush2.msra.mxu0 0.0
    %969 = vmatprep.subr.mxu0 0.0
    %970 = vmatpush2.msra.mxu0 0.0
    %971 = vmatprep.subr.mxu0 0.0
    %972 = vmatpush2.msra.mxu0 0.0
    %973 = vmatprep.subr.mxu0 0.0
    %974 = vmatpush2.msra.mxu0 0.0
    %975 = vmatprep.subr.mxu0 0.0
    %976 = vmatpush2.msra.mxu0 0.0
    %977 = vmatprep.mubr.f32.mxu0 0.0
    %978 = vmatmul.mubr.f32.gmra.mxu0 %v908
    %v979 = vpop.f32.mrf.mxu0
    %v980 = vadd.f32 0.0, %v979
    %v981 = vpop.f32.mrf.mxu0
    %982 = vmatprep.mubr.f32.mxu0 0.0
    %983 = vmatmul.mubr.f32.gmra.mxu0 %v911
    %v984 = vpop.f32.mrf.mxu0
    %v985 = vadd.f32 0.0, %v984
    %v986 = vpop.f32.mrf.mxu0
    %987 = vdwg.mxu0
    %v989 = vsel %vm249, %v497, 0
    %v992 = vsel %vm249, %v570, 0
    %994 = vmatprep.subr.mxu0 0.0
    %995 = vmatpush1.msra.mxu0 0.0
    %996 = vmatprep.subr.mxu0 0.0
    %997 = vmatpush1.msra.mxu0 0.0
    %998 = vmatprep.subr.mxu0 0.0
    %999 = vmatpush1.msra.mxu0 0.0
    %1000 = vmatprep.subr.mxu0 0.0
    %1001 = vmatpush1.msra.mxu0 0.0
    %1002 = vmatprep.subr.mxu0 0.0
    %1003 = vmatpush1.msra.mxu0 0.0
    %1004 = vmatprep.subr.mxu0 0.0
    %1005 = vmatpush1.msra.mxu0 0.0
    %1006 = vmatprep.subr.mxu0 0.0
    %1007 = vmatpush1.msra.mxu0 0.0
    %1008 = vmatprep.subr.mxu0 0.0
    %1009 = vmatpush1.msra.mxu0 0.0
    %1010 = vmatprep.subr.mxu0 0.0
    %1011 = vmatpush1.msra.mxu0 0.0
    %1012 = vmatprep.subr.mxu0 0.0
    %1013 = vmatpush1.msra.mxu0 0.0
    %1014 = vmatprep.subr.mxu0 0.0
    %1015 = vmatpush1.msra.mxu0 0.0
    %1016 = vmatprep.subr.mxu0 0.0
    %1017 = vmatpush1.msra.mxu0 0.0
    %1018 = vmatprep.subr.mxu0 0.0
    %1019 = vmatpush1.msra.mxu0 0.0
    %1020 = vmatprep.subr.mxu0 0.0
    %1021 = vmatpush1.msra.mxu0 0.0
    %1022 = vmatprep.subr.mxu0 0.0
    %1023 = vmatpush1.msra.mxu0 0.0
    %1024 = vmatprep.subr.mxu0 0.0
    %1025 = vmatpush1.msra.mxu0 %v242
    %1026 = vmatprep.subr.mxu0 0.0
    %1027 = vmatpush2.msra.mxu0 0.0
    %1028 = vmatprep.subr.mxu0 0.0
    %1029 = vmatpush2.msra.mxu0 0.0
    %1030 = vmatprep.subr.mxu0 0.0
    %1031 = vmatpush2.msra.mxu0 0.0
    %1032 = vmatprep.subr.mxu0 0.0
    %1033 = vmatpush2.msra.mxu0 0.0
    %1034 = vmatprep.subr.mxu0 0.0
    %1035 = vmatpush2.msra.mxu0 0.0
    %1036 = vmatprep.subr.mxu0 0.0
    %1037 = vmatpush2.msra.mxu0 0.0
    %1038 = vmatprep.subr.mxu0 0.0
    %1039 = vmatpush2.msra.mxu0 0.0
    %1040 = vmatprep.subr.mxu0 0.0
    %1041 = vmatpush2.msra.mxu0 0.0
    %1042 = vmatprep.subr.mxu0 0.0
    %1043 = vmatpush2.msra.mxu0 0.0
    %1044 = vmatprep.subr.mxu0 0.0
    %1045 = vmatpush2.msra.mxu0 0.0
    %1046 = vmatprep.subr.mxu0 0.0
    %1047 = vmatpush2.msra.mxu0 0.0
    %1048 = vmatprep.subr.mxu0 0.0
    %1049 = vmatpush2.msra.mxu0 0.0
    %1050 = vmatprep.subr.mxu0 0.0
    %1051 = vmatpush2.msra.mxu0 0.0
    %1052 = vmatprep.subr.mxu0 0.0
    %1053 = vmatpush2.msra.mxu0 0.0
    %1054 = vmatprep.subr.mxu0 0.0
    %1055 = vmatpush2.msra.mxu0 0.0
    %1056 = vmatprep.subr.mxu0 0.0
    %1057 = vmatpush2.msra.mxu0 0.0
    %1058 = vmatprep.mubr.f32.mxu0 0.0
    %1059 = vmatmul.mubr.f32.gmra.mxu0 %v989
    %v1060 = vpop.f32.mrf.mxu0
    %v1061 = vadd.f32 %v980, %v1060
    %v1062 = vpop.f32.mrf.mxu0
    %1063 = vmatprep.mubr.f32.mxu0 0.0
    %1064 = vmatmul.mubr.f32.gmra.mxu0 %v992
    %v1065 = vpop.f32.mrf.mxu0
    %v1066 = vadd.f32 %v985, %v1065
    %v1067 = vpop.f32.mrf.mxu0
    %1068 = vdwg.mxu0
    %1069 = vrot.lane.b32.xlu0 %v207, 112
    %v1070 = vpop.permute.xlu0 %1069
    %1071 = vrot.lane.b32.xlu0 %v235, 48
    %v1072 = vpop.permute.xlu0 %1071
    %v1073 = vsel %vm249, %v1070, 0
    %v1075 = vsel %vm249, %v1072, 0
    %1077 = vmatprep.subr.mxu0 0.0
    %1078 = vmatpush1.xpose.msra.mxu0 0.0
    %1079 = vmatprep.subr.mxu0 0.0
    %1080 = vmatpush1.xpose.msra.mxu0 0.0
    %1081 = vmatprep.subr.mxu0 0.0
    %1082 = vmatpush1.xpose.msra.mxu0 0.0
    %1083 = vmatprep.subr.mxu0 0.0
    %1084 = vmatpush1.xpose.msra.mxu0 0.0
    %1085 = vmatprep.subr.mxu0 0.0
    %1086 = vmatpush1.xpose.msra.mxu0 0.0
    %1087 = vmatprep.subr.mxu0 0.0
    %1088 = vmatpush1.xpose.msra.mxu0 0.0
    %1089 = vmatprep.subr.mxu0 0.0
    %1090 = vmatpush1.xpose.msra.mxu0 0.0
    %1091 = vmatprep.subr.mxu0 0.0
    %1092 = vmatpush1.xpose.msra.mxu0 0.0
    %1093 = vmatprep.subr.mxu0 0.0
    %1094 = vmatpush1.xpose.msra.mxu0 0.0
    %1095 = vmatprep.subr.mxu0 0.0
    %1096 = vmatpush1.xpose.msra.mxu0 0.0
    %1097 = vmatprep.subr.mxu0 0.0
    %1098 = vmatpush1.xpose.msra.mxu0 0.0
    %1099 = vmatprep.subr.mxu0 0.0
    %1100 = vmatpush1.xpose.msra.mxu0 0.0
    %1101 = vmatprep.subr.mxu0 0.0
    %1102 = vmatpush1.xpose.msra.mxu0 0.0
    %1103 = vmatprep.subr.mxu0 0.0
    %1104 = vmatpush1.xpose.msra.mxu0 0.0
    %1105 = vmatprep.subr.mxu0 0.0
    %1106 = vmatpush1.xpose.msra.mxu0 0.0
    %1107 = vmatprep.subr.mxu0 0.0
    %1108 = vmatpush1.xpose.msra.mxu0 %v1075
    %1109 = vmatprep.subr.mxu0 0.0
    %1110 = vmatpush2.xpose.msra.mxu0 0.0
    %1111 = vmatprep.subr.mxu0 0.0
    %1112 = vmatpush2.xpose.msra.mxu0 0.0
    %1113 = vmatprep.subr.mxu0 0.0
    %1114 = vmatpush2.xpose.msra.mxu0 0.0
    %1115 = vmatprep.subr.mxu0 0.0
    %1116 = vmatpush2.xpose.msra.mxu0 0.0
    %1117 = vmatprep.subr.mxu0 0.0
    %1118 = vmatpush2.xpose.msra.mxu0 0.0
    %1119 = vmatprep.subr.mxu0 0.0
    %1120 = vmatpush2.xpose.msra.mxu0 0.0
    %1121 = vmatprep.subr.mxu0 0.0
    %1122 = vmatpush2.xpose.msra.mxu0 0.0
    %1123 = vmatprep.subr.mxu0 0.0
    %1124 = vmatpush2.xpose.msra.mxu0 0.0
    %1125 = vmatprep.subr.mxu0 0.0
    %1126 = vmatpush2.xpose.msra.mxu0 0.0
    %1127 = vmatprep.subr.mxu0 0.0
    %1128 = vmatpush2.xpose.msra.mxu0 0.0
    %1129 = vmatprep.subr.mxu0 0.0
    %1130 = vmatpush2.xpose.msra.mxu0 0.0
    %1131 = vmatprep.subr.mxu0 0.0
    %1132 = vmatpush2.xpose.msra.mxu0 0.0
    %1133 = vmatprep.subr.mxu0 0.0
    %1134 = vmatpush2.xpose.msra.mxu0 0.0
    %1135 = vmatprep.subr.mxu0 0.0
    %1136 = vmatpush2.xpose.msra.mxu0 0.0
    %1137 = vmatprep.subr.mxu0 0.0
    %1138 = vmatpush2.xpose.msra.mxu0 0.0
    %1139 = vmatprep.subr.mxu0 0.0
    %1140 = vmatpush2.xpose.msra.mxu0 0.0
    %1141 = vmatprep.mubr.f32.mxu0 0.0
    %1142 = vmatmul.mubr.f32.gmra.mxu0 %v1073
    %v1143 = vpop.f32.mrf.mxu0
    %v1144 = vadd.f32 0.0, %v1143
    %v1145 = vpop.f32.mrf.mxu0
    %1146 = vdwg.mxu0
    %1147 = vrot.lane.b32.xlu0 %v208, 112
    %v1148 = vpop.permute.xlu0 %1147
    %1149 = vrot.lane.b32.xlu0 %v236, 48
    %v1150 = vpop.permute.xlu0 %1149
    %v1151 = vsel %vm249, %v1148, 0
    %v1153 = vsel %vm249, %v1150, 0
    %1155 = vmatprep.subr.mxu0 0.0
    %1156 = vmatpush1.xpose.msra.mxu0 0.0
    %1157 = vmatprep.subr.mxu0 0.0
    %1158 = vmatpush1.xpose.msra.mxu0 0.0
    %1159 = vmatprep.subr.mxu0 0.0
    %1160 = vmatpush1.xpose.msra.mxu0 0.0
    %1161 = vmatprep.subr.mxu0 0.0
    %1162 = vmatpush1.xpose.msra.mxu0 0.0
    %1163 = vmatprep.subr.mxu0 0.0
    %1164 = vmatpush1.xpose.msra.mxu0 0.0
    %1165 = vmatprep.subr.mxu0 0.0
    %1166 = vmatpush1.xpose.msra.mxu0 0.0
    %1167 = vmatprep.subr.mxu0 0.0
    %1168 = vmatpush1.xpose.msra.mxu0 0.0
    %1169 = vmatprep.subr.mxu0 0.0
    %1170 = vmatpush1.xpose.msra.mxu0 0.0
    %1171 = vmatprep.subr.mxu0 0.0
    %1172 = vmatpush1.xpose.msra.mxu0 0.0
    %1173 = vmatprep.subr.mxu0 0.0
    %1174 = vmatpush1.xpose.msra.mxu0 0.0
    %1175 = vmatprep.subr.mxu0 0.0
    %1176 = vmatpush1.xpose.msra.mxu0 0.0
    %1177 = vmatprep.subr.mxu0 0.0
    %1178 = vmatpush1.xpose.msra.mxu0 0.0
    %1179 = vmatprep.subr.mxu0 0.0
    %1180 = vmatpush1.xpose.msra.mxu0 0.0
    %1181 = vmatprep.subr.mxu0 0.0
    %1182 = vmatpush1.xpose.msra.mxu0 0.0
    %1183 = vmatprep.subr.mxu0 0.0
    %1184 = vmatpush1.xpose.msra.mxu0 0.0
    %1185 = vmatprep.subr.mxu0 0.0
    %1186 = vmatpush1.xpose.msra.mxu0 %v1153
    %1187 = vmatprep.subr.mxu0 0.0
    %1188 = vmatpush2.xpose.msra.mxu0 0.0
    %1189 = vmatprep.subr.mxu0 0.0
    %1190 = vmatpush2.xpose.msra.mxu0 0.0
    %1191 = vmatprep.subr.mxu0 0.0
    %1192 = vmatpush2.xpose.msra.mxu0 0.0
    %1193 = vmatprep.subr.mxu0 0.0
    %1194 = vmatpush2.xpose.msra.mxu0 0.0
    %1195 = vmatprep.subr.mxu0 0.0
    %1196 = vmatpush2.xpose.msra.mxu0 0.0
    %1197 = vmatprep.subr.mxu0 0.0
    %1198 = vmatpush2.xpose.msra.mxu0 0.0
    %1199 = vmatprep.subr.mxu0 0.0
    %1200 = vmatpush2.xpose.msra.mxu0 0.0
    %1201 = vmatprep.subr.mxu0 0.0
    %1202 = vmatpush2.xpose.msra.mxu0 0.0
    %1203 = vmatprep.subr.mxu0 0.0
    %1204 = vmatpush2.xpose.msra.mxu0 0.0
    %1205 = vmatprep.subr.mxu0 0.0
    %1206 = vmatpush2.xpose.msra.mxu0 0.0
    %1207 = vmatprep.subr.mxu0 0.0
    %1208 = vmatpush2.xpose.msra.mxu0 0.0
    %1209 = vmatprep.subr.mxu0 0.0
    %1210 = vmatpush2.xpose.msra.mxu0 0.0
    %1211 = vmatprep.subr.mxu0 0.0
    %1212 = vmatpush2.xpose.msra.mxu0 0.0
    %1213 = vmatprep.subr.mxu0 0.0
    %1214 = vmatpush2.xpose.msra.mxu0 0.0
    %1215 = vmatprep.subr.mxu0 0.0
    %1216 = vmatpush2.xpose.msra.mxu0 0.0
    %1217 = vmatprep.subr.mxu0 0.0
    %1218 = vmatpush2.xpose.msra.mxu0 0.0
    %1219 = vmatprep.mubr.f32.mxu0 0.0
    %1220 = vmatmul.mubr.f32.gmra.mxu0 %v1151
    %v1221 = vpop.f32.mrf.mxu0
    %v1222 = vadd.f32 0.0, %v1221
    %v1223 = vpop.f32.mrf.mxu0
    %1224 = vdwg.mxu0
    %v1225 = vsel %vm241, %v1144, -1e+30
    %v1226 = vsel %vm241, %v1222, -1e+30
    %v1227 = vsel %vm249, %v1225, -inf
    %1228 = vmax.xlane.f32.xlu0 %v1227
    %v1229 = vpop.xlane.xlu0 %1228
    %v1230 = vsel %vm249, %v1226, -inf
    %1231 = vmax.xlane.f32.xlu0 %v1230
    %v1232 = vpop.xlane.xlu0 %1231
    %v1233 = vsub.f32 %v1225, %v1229
    %v1234 = vsub.f32 %v1226, %v1232
    %v1235 = vmul.f32 %v1233, 1.442695
    %v1236 = vpow.pop %v1235
    %v1237 = vmul.f32 %v1234, 1.442695
    %v1238 = vpow.pop %v1237
    %v1239 = vsel %vm249, %v1236, 0.0
    %1240 = vadd.xlane.f32.xlu0 %v1239
    %v1241 = vpop.xlane.xlu0 %1240
    %v1242 = vsel %vm249, %v1238, 0.0
    %1243 = vadd.xlane.f32.xlu0 %v1242
    %v1244 = vpop.xlane.xlu0 %1243
    %v1245 = vrcp.pop %v1241
    %v1246 = vrcp.pop %v1244
    %v1247 = vmul.f32 %v1236, %v1245
    %v1248 = vmul.f32 %v1238, %v1246
    %1249 = vrot.lane.b32.xlu0 %v175, 112
    %v1250 = vpop.permute.xlu0 %1249
    %v1253 = vsel %vm249, %v1247, 0
    %1255 = vmatprep.subr.mxu0 0.0
    %1256 = vmatpush1.msra.mxu0 0.0
    %1257 = vmatprep.subr.mxu0 0.0
    %1258 = vmatpush1.msra.mxu0 0.0
    %1259 = vmatprep.subr.mxu0 0.0
    %1260 = vmatpush1.msra.mxu0 0.0
    %1261 = vmatprep.subr.mxu0 0.0
    %1262 = vmatpush1.msra.mxu0 0.0
    %1263 = vmatprep.subr.mxu0 0.0
    %1264 = vmatpush1.msra.mxu0 0.0
    %1265 = vmatprep.subr.mxu0 0.0
    %1266 = vmatpush1.msra.mxu0 0.0
    %1267 = vmatprep.subr.mxu0 0.0
    %1268 = vmatpush1.msra.mxu0 0.0
    %1269 = vmatprep.subr.mxu0 0.0
    %1270 = vmatpush1.msra.mxu0 0.0
    %1271 = vmatprep.subr.mxu0 0.0
    %1272 = vmatpush1.msra.mxu0 0.0
    %1273 = vmatprep.subr.mxu0 0.0
    %1274 = vmatpush1.msra.mxu0 0.0
    %1275 = vmatprep.subr.mxu0 0.0
    %1276 = vmatpush1.msra.mxu0 0.0
    %1277 = vmatprep.subr.mxu0 0.0
    %1278 = vmatpush1.msra.mxu0 0.0
    %1279 = vmatprep.subr.mxu0 0.0
    %1280 = vmatpush1.msra.mxu0 0.0
    %1281 = vmatprep.subr.mxu0 0.0
    %1282 = vmatpush1.msra.mxu0 0.0
    %1283 = vmatprep.subr.mxu0 0.0
    %1284 = vmatpush1.msra.mxu0 0.0
    %1285 = vmatprep.subr.mxu0 0.0
    %1286 = vmatpush1.msra.mxu0 %v1250
    %1287 = vmatprep.subr.mxu0 0.0
    %1288 = vmatpush2.msra.mxu0 0.0
    %1289 = vmatprep.subr.mxu0 0.0
    %1290 = vmatpush2.msra.mxu0 0.0
    %1291 = vmatprep.subr.mxu0 0.0
    %1292 = vmatpush2.msra.mxu0 0.0
    %1293 = vmatprep.subr.mxu0 0.0
    %1294 = vmatpush2.msra.mxu0 0.0
    %1295 = vmatprep.subr.mxu0 0.0
    %1296 = vmatpush2.msra.mxu0 0.0
    %1297 = vmatprep.subr.mxu0 0.0
    %1298 = vmatpush2.msra.mxu0 0.0
    %1299 = vmatprep.subr.mxu0 0.0
    %1300 = vmatpush2.msra.mxu0 0.0
    %1301 = vmatprep.subr.mxu0 0.0
    %1302 = vmatpush2.msra.mxu0 0.0
    %1303 = vmatprep.subr.mxu0 0.0
    %1304 = vmatpush2.msra.mxu0 0.0
    %1305 = vmatprep.subr.mxu0 0.0
    %1306 = vmatpush2.msra.mxu0 0.0
    %1307 = vmatprep.subr.mxu0 0.0
    %1308 = vmatpush2.msra.mxu0 0.0
    %1309 = vmatprep.subr.mxu0 0.0
    %1310 = vmatpush2.msra.mxu0 0.0
    %1311 = vmatprep.subr.mxu0 0.0
    %1312 = vmatpush2.msra.mxu0 0.0
    %1313 = vmatprep.subr.mxu0 0.0
    %1314 = vmatpush2.msra.mxu0 0.0
    %1315 = vmatprep.subr.mxu0 0.0
    %1316 = vmatpush2.msra.mxu0 0.0
    %1317 = vmatprep.subr.mxu0 0.0
    %1318 = vmatpush2.msra.mxu0 0.0
    %1319 = vmatprep.mubr.f32.mxu0 0.0
    %1320 = vmatmul.mubr.f32.gmra.mxu0 %v1253
    %v1321 = vpop.f32.mrf.mxu0
    %v1322 = vadd.f32 0.0, %v1321
    %v1323 = vpop.f32.mrf.mxu0
    %1324 = vdwg.mxu0
    %1325 = vrot.lane.b32.xlu0 %v181, 112
    %v1326 = vpop.permute.xlu0 %1325
    %v1329 = vsel %vm249, %v1248, 0
    %1331 = vmatprep.subr.mxu0 0.0
    %1332 = vmatpush1.msra.mxu0 0.0
    %1333 = vmatprep.subr.mxu0 0.0
    %1334 = vmatpush1.msra.mxu0 0.0
    %1335 = vmatprep.subr.mxu0 0.0
    %1336 = vmatpush1.msra.mxu0 0.0
    %1337 = vmatprep.subr.mxu0 0.0
    %1338 = vmatpush1.msra.mxu0 0.0
    %1339 = vmatprep.subr.mxu0 0.0
    %1340 = vmatpush1.msra.mxu0 0.0
    %1341 = vmatprep.subr.mxu0 0.0
    %1342 = vmatpush1.msra.mxu0 0.0
    %1343 = vmatprep.subr.mxu0 0.0
    %1344 = vmatpush1.msra.mxu0 0.0
    %1345 = vmatprep.subr.mxu0 0.0
    %1346 = vmatpush1.msra.mxu0 0.0
    %1347 = vmatprep.subr.mxu0 0.0
    %1348 = vmatpush1.msra.mxu0 0.0
    %1349 = vmatprep.subr.mxu0 0.0
    %1350 = vmatpush1.msra.mxu0 0.0
    %1351 = vmatprep.subr.mxu0 0.0
    %1352 = vmatpush1.msra.mxu0 0.0
    %1353 = vmatprep.subr.mxu0 0.0
    %1354 = vmatpush1.msra.mxu0 0.0
    %1355 = vmatprep.subr.mxu0 0.0
    %1356 = vmatpush1.msra.mxu0 0.0
    %1357 = vmatprep.subr.mxu0 0.0
    %1358 = vmatpush1.msra.mxu0 0.0
    %1359 = vmatprep.subr.mxu0 0.0
    %1360 = vmatpush1.msra.mxu0 0.0
    %1361 = vmatprep.subr.mxu0 0.0
    %1362 = vmatpush1.msra.mxu0 %v1326
    %1363 = vmatprep.subr.mxu0 0.0
    %1364 = vmatpush2.msra.mxu0 0.0
    %1365 = vmatprep.subr.mxu0 0.0
    %1366 = vmatpush2.msra.mxu0 0.0
    %1367 = vmatprep.subr.mxu0 0.0
    %1368 = vmatpush2.msra.mxu0 0.0
    %1369 = vmatprep.subr.mxu0 0.0
    %1370 = vmatpush2.msra.mxu0 0.0
    %1371 = vmatprep.subr.mxu0 0.0
    %1372 = vmatpush2.msra.mxu0 0.0
    %1373 = vmatprep.subr.mxu0 0.0
    %1374 = vmatpush2.msra.mxu0 0.0
    %1375 = vmatprep.subr.mxu0 0.0
    %1376 = vmatpush2.msra.mxu0 0.0
    %1377 = vmatprep.subr.mxu0 0.0
    %1378 = vmatpush2.msra.mxu0 0.0
    %1379 = vmatprep.subr.mxu0 0.0
    %1380 = vmatpush2.msra.mxu0 0.0
    %1381 = vmatprep.subr.mxu0 0.0
    %1382 = vmatpush2.msra.mxu0 0.0
    %1383 = vmatprep.subr.mxu0 0.0
    %1384 = vmatpush2.msra.mxu0 0.0
    %1385 = vmatprep.subr.mxu0 0.0
    %1386 = vmatpush2.msra.mxu0 0.0
    %1387 = vmatprep.subr.mxu0 0.0
    %1388 = vmatpush2.msra.mxu0 0.0
    %1389 = vmatprep.subr.mxu0 0.0
    %1390 = vmatpush2.msra.mxu0 0.0
    %1391 = vmatprep.subr.mxu0 0.0
    %1392 = vmatpush2.msra.mxu0 0.0
    %1393 = vmatprep.subr.mxu0 0.0
    %1394 = vmatpush2.msra.mxu0 0.0
    %1395 = vmatprep.mubr.f32.mxu0 0.0
    %1396 = vmatmul.mubr.f32.gmra.mxu0 %v1329
    %v1397 = vpop.f32.mrf.mxu0
    %v1398 = vadd.f32 0.0, %v1397
    %v1399 = vpop.f32.mrf.mxu0
    %1400 = vdwg.mxu0
    %v1402 = vsel %vm249, %v1322, 0
    %v1405 = vsel %vm249, %v1398, 0
    %1407 = vmatprep.subr.mxu0 0.0
    %1408 = vmatpush1.msra.mxu0 0.0
    %1409 = vmatprep.subr.mxu0 0.0
    %1410 = vmatpush1.msra.mxu0 0.0
    %1411 = vmatprep.subr.mxu0 0.0
    %1412 = vmatpush1.msra.mxu0 0.0
    %1413 = vmatprep.subr.mxu0 0.0
    %1414 = vmatpush1.msra.mxu0 0.0
    %1415 = vmatprep.subr.mxu0 0.0
    %1416 = vmatpush1.msra.mxu0 0.0
    %1417 = vmatprep.subr.mxu0 0.0
    %1418 = vmatpush1.msra.mxu0 0.0
    %1419 = vmatprep.subr.mxu0 0.0
    %1420 = vmatpush1.msra.mxu0 0.0
    %1421 = vmatprep.subr.mxu0 0.0
    %1422 = vmatpush1.msra.mxu0 0.0
    %1423 = vmatprep.subr.mxu0 0.0
    %1424 = vmatpush1.msra.mxu0 0.0
    %1425 = vmatprep.subr.mxu0 0.0
    %1426 = vmatpush1.msra.mxu0 0.0
    %1427 = vmatprep.subr.mxu0 0.0
    %1428 = vmatpush1.msra.mxu0 0.0
    %1429 = vmatprep.subr.mxu0 0.0
    %1430 = vmatpush1.msra.mxu0 0.0
    %1431 = vmatprep.subr.mxu0 0.0
    %1432 = vmatpush1.msra.mxu0 0.0
    %1433 = vmatprep.subr.mxu0 0.0
    %1434 = vmatpush1.msra.mxu0 0.0
    %1435 = vmatprep.subr.mxu0 0.0
    %1436 = vmatpush1.msra.mxu0 0.0
    %1437 = vmatprep.subr.mxu0 0.0
    %1438 = vmatpush1.msra.mxu0 %v244
    %1439 = vmatprep.subr.mxu0 0.0
    %1440 = vmatpush2.msra.mxu0 0.0
    %1441 = vmatprep.subr.mxu0 0.0
    %1442 = vmatpush2.msra.mxu0 0.0
    %1443 = vmatprep.subr.mxu0 0.0
    %1444 = vmatpush2.msra.mxu0 0.0
    %1445 = vmatprep.subr.mxu0 0.0
    %1446 = vmatpush2.msra.mxu0 0.0
    %1447 = vmatprep.subr.mxu0 0.0
    %1448 = vmatpush2.msra.mxu0 0.0
    %1449 = vmatprep.subr.mxu0 0.0
    %1450 = vmatpush2.msra.mxu0 0.0
    %1451 = vmatprep.subr.mxu0 0.0
    %1452 = vmatpush2.msra.mxu0 0.0
    %1453 = vmatprep.subr.mxu0 0.0
    %1454 = vmatpush2.msra.mxu0 0.0
    %1455 = vmatprep.subr.mxu0 0.0
    %1456 = vmatpush2.msra.mxu0 0.0
    %1457 = vmatprep.subr.mxu0 0.0
    %1458 = vmatpush2.msra.mxu0 0.0
    %1459 = vmatprep.subr.mxu0 0.0
    %1460 = vmatpush2.msra.mxu0 0.0
    %1461 = vmatprep.subr.mxu0 0.0
    %1462 = vmatpush2.msra.mxu0 0.0
    %1463 = vmatprep.subr.mxu0 0.0
    %1464 = vmatpush2.msra.mxu0 0.0
    %1465 = vmatprep.subr.mxu0 0.0
    %1466 = vmatpush2.msra.mxu0 0.0
    %1467 = vmatprep.subr.mxu0 0.0
    %1468 = vmatpush2.msra.mxu0 0.0
    %1469 = vmatprep.subr.mxu0 0.0
    %1470 = vmatpush2.msra.mxu0 0.0
    %1471 = vmatprep.mubr.f32.mxu0 0.0
    %1472 = vmatmul.mubr.f32.gmra.mxu0 %v1402
    %v1473 = vpop.f32.mrf.mxu0
    %v1474 = vadd.f32 0.0, %v1473
    %v1475 = vpop.f32.mrf.mxu0
    %1476 = vmatprep.mubr.f32.mxu0 0.0
    %1477 = vmatmul.mubr.f32.gmra.mxu0 %v1405
    %v1478 = vpop.f32.mrf.mxu0
    %v1479 = vadd.f32 0.0, %v1478
    %v1480 = vpop.f32.mrf.mxu0
    %1481 = vdwg.mxu0
    %v1482 = vadd.f32 %v1061, %v1474
    %v1483 = vadd.f32 %v1066, %v1479
    %1484 = vrot.lane.b32.xlu0 %v207, 104
    %v1485 = vpop.permute.xlu0 %1484
    %1486 = vrot.lane.b32.xlu0 %v235, 40
    %v1487 = vpop.permute.xlu0 %1486
    %v1488 = vsel %vm249, %v1485, 0
    %v1490 = vsel %vm249, %v1487, 0
    %1492 = vmatprep.subr.mxu0 0.0
    %1493 = vmatpush1.xpose.msra.mxu0 0.0
    %1494 = vmatprep.subr.mxu0 0.0
    %1495 = vmatpush1.xpose.msra.mxu0 0.0
    %1496 = vmatprep.subr.mxu0 0.0
    %1497 = vmatpush1.xpose.msra.mxu0 0.0
    %1498 = vmatprep.subr.mxu0 0.0
    %1499 = vmatpush1.xpose.msra.mxu0 0.0
    %1500 = vmatprep.subr.mxu0 0.0
    %1501 = vmatpush1.xpose.msra.mxu0 0.0
    %1502 = vmatprep.subr.mxu0 0.0
    %1503 = vmatpush1.xpose.msra.mxu0 0.0
    %1504 = vmatprep.subr.mxu0 0.0
    %1505 = vmatpush1.xpose.msra.mxu0 0.0
    %1506 = vmatprep.subr.mxu0 0.0
    %1507 = vmatpush1.xpose.msra.mxu0 0.0
    %1508 = vmatprep.subr.mxu0 0.0
    %1509 = vmatpush1.xpose.msra.mxu0 0.0
    %1510 = vmatprep.subr.mxu0 0.0
    %1511 = vmatpush1.xpose.msra.mxu0 0.0
    %1512 = vmatprep.subr.mxu0 0.0
    %1513 = vmatpush1.xpose.msra.mxu0 0.0
    %1514 = vmatprep.subr.mxu0 0.0
    %1515 = vmatpush1.xpose.msra.mxu0 0.0
    %1516 = vmatprep.subr.mxu0 0.0
    %1517 = vmatpush1.xpose.msra.mxu0 0.0
    %1518 = vmatprep.subr.mxu0 0.0
    %1519 = vmatpush1.xpose.msra.mxu0 0.0
    %1520 = vmatprep.subr.mxu0 0.0
    %1521 = vmatpush1.xpose.msra.mxu0 0.0
    %1522 = vmatprep.subr.mxu0 0.0
    %1523 = vmatpush1.xpose.msra.mxu0 %v1490
    %1524 = vmatprep.subr.mxu0 0.0
    %1525 = vmatpush2.xpose.msra.mxu0 0.0
    %1526 = vmatprep.subr.mxu0 0.0
    %1527 = vmatpush2.xpose.msra.mxu0 0.0
    %1528 = vmatprep.subr.mxu0 0.0
    %1529 = vmatpush2.xpose.msra.mxu0 0.0
    %1530 = vmatprep.subr.mxu0 0.0
    %1531 = vmatpush2.xpose.msra.mxu0 0.0
    %1532 = vmatprep.subr.mxu0 0.0
    %1533 = vmatpush2.xpose.msra.mxu0 0.0
    %1534 = vmatprep.subr.mxu0 0.0
    %1535 = vmatpush2.xpose.msra.mxu0 0.0
    %1536 = vmatprep.subr.mxu0 0.0
    %1537 = vmatpush2.xpose.msra.mxu0 0.0
    %1538 = vmatprep.subr.mxu0 0.0
    %1539 = vmatpush2.xpose.msra.mxu0 0.0
    %1540 = vmatprep.subr.mxu0 0.0
    %1541 = vmatpush2.xpose.msra.mxu0 0.0
    %1542 = vmatprep.subr.mxu0 0.0
    %1543 = vmatpush2.xpose.msra.mxu0 0.0
    %1544 = vmatprep.subr.mxu0 0.0
    %1545 = vmatpush2.xpose.msra.mxu0 0.0
    %1546 = vmatprep.subr.mxu0 0.0
    %1547 = vmatpush2.xpose.msra.mxu0 0.0
    %1548 = vmatprep.subr.mxu0 0.0
    %1549 = vmatpush2.xpose.msra.mxu0 0.0
    %1550 = vmatprep.subr.mxu0 0.0
    %1551 = vmatpush2.xpose.msra.mxu0 0.0
    %1552 = vmatprep.subr.mxu0 0.0
    %1553 = vmatpush2.xpose.msra.mxu0 0.0
    %1554 = vmatprep.subr.mxu0 0.0
    %1555 = vmatpush2.xpose.msra.mxu0 0.0
    %1556 = vmatprep.mubr.f32.mxu0 0.0
    %1557 = vmatmul.mubr.f32.gmra.mxu0 %v1488
    %v1558 = vpop.f32.mrf.mxu0
    %v1559 = vadd.f32 0.0, %v1558
    %v1560 = vpop.f32.mrf.mxu0
    %1561 = vdwg.mxu0
    %1562 = vrot.lane.b32.xlu0 %v208, 104
    %v1563 = vpop.permute.xlu0 %1562
    %1564 = vrot.lane.b32.xlu0 %v236, 40
    %v1565 = vpop.permute.xlu0 %1564
    %v1566 = vsel %vm249, %v1563, 0
    %v1568 = vsel %vm249, %v1565, 0
    %1570 = vmatprep.subr.mxu0 0.0
    %1571 = vmatpush1.xpose.msra.mxu0 0.0
    %1572 = vmatprep.subr.mxu0 0.0
    %1573 = vmatpush1.xpose.msra.mxu0 0.0
    %1574 = vmatprep.subr.mxu0 0.0
    %1575 = vmatpush1.xpose.msra.mxu0 0.0
    %1576 = vmatprep.subr.mxu0 0.0
    %1577 = vmatpush1.xpose.msra.mxu0 0.0
    %1578 = vmatprep.subr.mxu0 0.0
    %1579 = vmatpush1.xpose.msra.mxu0 0.0
    %1580 = vmatprep.subr.mxu0 0.0
    %1581 = vmatpush1.xpose.msra.mxu0 0.0
    %1582 = vmatprep.subr.mxu0 0.0
    %1583 = vmatpush1.xpose.msra.mxu0 0.0
    %1584 = vmatprep.subr.mxu0 0.0
    %1585 = vmatpush1.xpose.msra.mxu0 0.0
    %1586 = vmatprep.subr.mxu0 0.0
    %1587 = vmatpush1.xpose.msra.mxu0 0.0
    %1588 = vmatprep.subr.mxu0 0.0
    %1589 = vmatpush1.xpose.msra.mxu0 0.0
    %1590 = vmatprep.subr.mxu0 0.0
    %1591 = vmatpush1.xpose.msra.mxu0 0.0
    %1592 = vmatprep.subr.mxu0 0.0
    %1593 = vmatpush1.xpose.msra.mxu0 0.0
    %1594 = vmatprep.subr.mxu0 0.0
    %1595 = vmatpush1.xpose.msra.mxu0 0.0
    %1596 = vmatprep.subr.mxu0 0.0
    %1597 = vmatpush1.xpose.msra.mxu0 0.0
    %1598 = vmatprep.subr.mxu0 0.0
    %1599 = vmatpush1.xpose.msra.mxu0 0.0
    %1600 = vmatprep.subr.mxu0 0.0
    %1601 = vmatpush1.xpose.msra.mxu0 %v1568
    %1602 = vmatprep.subr.mxu0 0.0
    %1603 = vmatpush2.xpose.msra.mxu0 0.0
    %1604 = vmatprep.subr.mxu0 0.0
    %1605 = vmatpush2.xpose.msra.mxu0 0.0
    %1606 = vmatprep.subr.mxu0 0.0
    %1607 = vmatpush2.xpose.msra.mxu0 0.0
    %1608 = vmatprep.subr.mxu0 0.0
    %1609 = vmatpush2.xpose.msra.mxu0 0.0
    %1610 = vmatprep.subr.mxu0 0.0
    %1611 = vmatpush2.xpose.msra.mxu0 0.0
    %1612 = vmatprep.subr.mxu0 0.0
    %1613 = vmatpush2.xpose.msra.mxu0 0.0
    %1614 = vmatprep.subr.mxu0 0.0
    %1615 = vmatpush2.xpose.msra.mxu0 0.0
    %1616 = vmatprep.subr.mxu0 0.0
    %1617 = vmatpush2.xpose.msra.mxu0 0.0
    %1618 = vmatprep.subr.mxu0 0.0
    %1619 = vmatpush2.xpose.msra.mxu0 0.0
    %1620 = vmatprep.subr.mxu0 0.0
    %1621 = vmatpush2.xpose.msra.mxu0 0.0
    %1622 = vmatprep.subr.mxu0 0.0
    %1623 = vmatpush2.xpose.msra.mxu0 0.0
    %1624 = vmatprep.subr.mxu0 0.0
    %1625 = vmatpush2.xpose.msra.mxu0 0.0
    %1626 = vmatprep.subr.mxu0 0.0
    %1627 = vmatpush2.xpose.msra.mxu0 0.0
    %1628 = vmatprep.subr.mxu0 0.0
    %1629 = vmatpush2.xpose.msra.mxu0 0.0
    %1630 = vmatprep.subr.mxu0 0.0
    %1631 = vmatpush2.xpose.msra.mxu0 0.0
    %1632 = vmatprep.subr.mxu0 0.0
    %1633 = vmatpush2.xpose.msra.mxu0 0.0
    %1634 = vmatprep.mubr.f32.mxu0 0.0
    %1635 = vmatmul.mubr.f32.gmra.mxu0 %v1566
    %v1636 = vpop.f32.mrf.mxu0
    %v1637 = vadd.f32 0.0, %v1636
    %v1638 = vpop.f32.mrf.mxu0
    %1639 = vdwg.mxu0
    %v1640 = vsel %vm241, %v1559, -1e+30
    %v1641 = vsel %vm241, %v1637, -1e+30
    %v1642 = vsel %vm249, %v1640, -inf
    %1643 = vmax.xlane.f32.xlu0 %v1642
    %v1644 = vpop.xlane.xlu0 %1643
    %v1645 = vsel %vm249, %v1641, -inf
    %1646 = vmax.xlane.f32.xlu0 %v1645
    %v1647 = vpop.xlane.xlu0 %1646
    %v1648 = vsub.f32 %v1640, %v1644
    %v1649 = vsub.f32 %v1641, %v1647
    %v1650 = vmul.f32 %v1648, 1.442695
    %v1651 = vpow.pop %v1650
    %v1652 = vmul.f32 %v1649, 1.442695
    %v1653 = vpow.pop %v1652
    %v1654 = vsel %vm249, %v1651, 0.0
    %1655 = vadd.xlane.f32.xlu0 %v1654
    %v1656 = vpop.xlane.xlu0 %1655
    %v1657 = vsel %vm249, %v1653, 0.0
    %1658 = vadd.xlane.f32.xlu0 %v1657
    %v1659 = vpop.xlane.xlu0 %1658
    %v1660 = vrcp.pop %v1656
    %v1661 = vrcp.pop %v1659
    %v1662 = vmul.f32 %v1651, %v1660
    %v1663 = vmul.f32 %v1653, %v1661
    %1664 = vrot.lane.b32.xlu0 %v175, 104
    %v1665 = vpop.permute.xlu0 %1664
    %v1668 = vsel %vm249, %v1662, 0
    %1670 = vmatprep.subr.mxu0 0.0
    %1671 = vmatpush1.msra.mxu0 0.0
    %1672 = vmatprep.subr.mxu0 0.0
    %1673 = vmatpush1.msra.mxu0 0.0
    %1674 = vmatprep.subr.mxu0 0.0
    %1675 = vmatpush1.msra.mxu0 0.0
    %1676 = vmatprep.subr.mxu0 0.0
    %1677 = vmatpush1.msra.mxu0 0.0
    %1678 = vmatprep.subr.mxu0 0.0
    %1679 = vmatpush1.msra.mxu0 0.0
    %1680 = vmatprep.subr.mxu0 0.0
    %1681 = vmatpush1.msra.mxu0 0.0
    %1682 = vmatprep.subr.mxu0 0.0
    %1683 = vmatpush1.msra.mxu0 0.0
    %1684 = vmatprep.subr.mxu0 0.0
    %1685 = vmatpush1.msra.mxu0 0.0
    %1686 = vmatprep.subr.mxu0 0.0
    %1687 = vmatpush1.msra.mxu0 0.0
    %1688 = vmatprep.subr.mxu0 0.0
    %1689 = vmatpush1.msra.mxu0 0.0
    %1690 = vmatprep.subr.mxu0 0.0
    %1691 = vmatpush1.msra.mxu0 0.0
    %1692 = vmatprep.subr.mxu0 0.0
    %1693 = vmatpush1.msra.mxu0 0.0
    %1694 = vmatprep.subr.mxu0 0.0
    %1695 = vmatpush1.msra.mxu0 0.0
    %1696 = vmatprep.subr.mxu0 0.0
    %1697 = vmatpush1.msra.mxu0 0.0
    %1698 = vmatprep.subr.mxu0 0.0
    %1699 = vmatpush1.msra.mxu0 0.0
    %1700 = vmatprep.subr.mxu0 0.0
    %1701 = vmatpush1.msra.mxu0 %v1665
    %1702 = vmatprep.subr.mxu0 0.0
    %1703 = vmatpush2.msra.mxu0 0.0
    %1704 = vmatprep.subr.mxu0 0.0
    %1705 = vmatpush2.msra.mxu0 0.0
    %1706 = vmatprep.subr.mxu0 0.0
    %1707 = vmatpush2.msra.mxu0 0.0
    %1708 = vmatprep.subr.mxu0 0.0
    %1709 = vmatpush2.msra.mxu0 0.0
    %1710 = vmatprep.subr.mxu0 0.0
    %1711 = vmatpush2.msra.mxu0 0.0
    %1712 = vmatprep.subr.mxu0 0.0
    %1713 = vmatpush2.msra.mxu0 0.0
    %1714 = vmatprep.subr.mxu0 0.0
    %1715 = vmatpush2.msra.mxu0 0.0
    %1716 = vmatprep.subr.mxu0 0.0
    %1717 = vmatpush2.msra.mxu0 0.0
    %1718 = vmatprep.subr.mxu0 0.0
    %1719 = vmatpush2.msra.mxu0 0.0
    %1720 = vmatprep.subr.mxu0 0.0
    %1721 = vmatpush2.msra.mxu0 0.0
    %1722 = vmatprep.subr.mxu0 0.0
    %1723 = vmatpush2.msra.mxu0 0.0
    %1724 = vmatprep.subr.mxu0 0.0
    %1725 = vmatpush2.msra.mxu0 0.0
    %1726 = vmatprep.subr.mxu0 0.0
    %1727 = vmatpush2.msra.mxu0 0.0
    %1728 = vmatprep.subr.mxu0 0.0
    %1729 = vmatpush2.msra.mxu0 0.0
    %1730 = vmatprep.subr.mxu0 0.0
    %1731 = vmatpush2.msra.mxu0 0.0
    %1732 = vmatprep.subr.mxu0 0.0
    %1733 = vmatpush2.msra.mxu0 0.0
    %1734 = vmatprep.mubr.f32.mxu0 0.0
    %1735 = vmatmul.mubr.f32.gmra.mxu0 %v1668
    %v1736 = vpop.f32.mrf.mxu0
    %v1737 = vadd.f32 0.0, %v1736
    %v1738 = vpop.f32.mrf.mxu0
    %1739 = vdwg.mxu0
    %1740 = vrot.lane.b32.xlu0 %v181, 104
    %v1741 = vpop.permute.xlu0 %1740
    %v1744 = vsel %vm249, %v1663, 0
    %1746 = vmatprep.subr.mxu0 0.0
    %1747 = vmatpush1.msra.mxu0 0.0
    %1748 = vmatprep.subr.mxu0 0.0
    %1749 = vmatpush1.msra.mxu0 0.0
    %1750 = vmatprep.subr.mxu0 0.0
    %1751 = vmatpush1.msra.mxu0 0.0
    %1752 = vmatprep.subr.mxu0 0.0
    %1753 = vmatpush1.msra.mxu0 0.0
    %1754 = vmatprep.subr.mxu0 0.0
    %1755 = vmatpush1.msra.mxu0 0.0
    %1756 = vmatprep.subr.mxu0 0.0
    %1757 = vmatpush1.msra.mxu0 0.0
    %1758 = vmatprep.subr.mxu0 0.0
    %1759 = vmatpush1.msra.mxu0 0.0
    %1760 = vmatprep.subr.mxu0 0.0
    %1761 = vmatpush1.msra.mxu0 0.0
    %1762 = vmatprep.subr.mxu0 0.0
    %1763 = vmatpush1.msra.mxu0 0.0
    %1764 = vmatprep.subr.mxu0 0.0
    %1765 = vmatpush1.msra.mxu0 0.0
    %1766 = vmatprep.subr.mxu0 0.0
    %1767 = vmatpush1.msra.mxu0 0.0
    %1768 = vmatprep.subr.mxu0 0.0
    %1769 = vmatpush1.msra.mxu0 0.0
    %1770 = vmatprep.subr.mxu0 0.0
    %1771 = vmatpush1.msra.mxu0 0.0
    %1772 = vmatprep.subr.mxu0 0.0
    %1773 = vmatpush1.msra.mxu0 0.0
    %1774 = vmatprep.subr.mxu0 0.0
    %1775 = vmatpush1.msra.mxu0 0.0
    %1776 = vmatprep.subr.mxu0 0.0
    %1777 = vmatpush1.msra.mxu0 %v1741
    %1778 = vmatprep.subr.mxu0 0.0
    %1779 = vmatpush2.msra.mxu0 0.0
    %1780 = vmatprep.subr.mxu0 0.0
    %1781 = vmatpush2.msra.mxu0 0.0
    %1782 = vmatprep.subr.mxu0 0.0
    %1783 = vmatpush2.msra.mxu0 0.0
    %1784 = vmatprep.subr.mxu0 0.0
    %1785 = vmatpush2.msra.mxu0 0.0
    %1786 = vmatprep.subr.mxu0 0.0
    %1787 = vmatpush2.msra.mxu0 0.0
    %1788 = vmatprep.subr.mxu0 0.0
    %1789 = vmatpush2.msra.mxu0 0.0
    %1790 = vmatprep.subr.mxu0 0.0
    %1791 = vmatpush2.msra.mxu0 0.0
    %1792 = vmatprep.subr.mxu0 0.0
    %1793 = vmatpush2.msra.mxu0 0.0
    %1794 = vmatprep.subr.mxu0 0.0
    %1795 = vmatpush2.msra.mxu0 0.0
    %1796 = vmatprep.subr.mxu0 0.0
    %1797 = vmatpush2.msra.mxu0 0.0
    %1798 = vmatprep.subr.mxu0 0.0
    %1799 = vmatpush2.msra.mxu0 0.0
    %1800 = vmatprep.subr.mxu0 0.0
    %1801 = vmatpush2.msra.mxu0 0.0
    %1802 = vmatprep.subr.mxu0 0.0
    %1803 = vmatpush2.msra.mxu0 0.0
    %1804 = vmatprep.subr.mxu0 0.0
    %1805 = vmatpush2.msra.mxu0 0.0
    %1806 = vmatprep.subr.mxu0 0.0
    %1807 = vmatpush2.msra.mxu0 0.0
    %1808 = vmatprep.subr.mxu0 0.0
    %1809 = vmatpush2.msra.mxu0 0.0
    %1810 = vmatprep.mubr.f32.mxu0 0.0
    %1811 = vmatmul.mubr.f32.gmra.mxu0 %v1744
    %v1812 = vpop.f32.mrf.mxu0
    %v1813 = vadd.f32 0.0, %v1812
    %v1814 = vpop.f32.mrf.mxu0
    %1815 = vdwg.mxu0
    %v1817 = vsel %vm249, %v1737, 0
    %v1820 = vsel %vm249, %v1813, 0
    %1822 = vmatprep.subr.mxu0 0.0
    %1823 = vmatpush1.msra.mxu0 0.0
    %1824 = vmatprep.subr.mxu0 0.0
    %1825 = vmatpush1.msra.mxu0 0.0
    %1826 = vmatprep.subr.mxu0 0.0
    %1827 = vmatpush1.msra.mxu0 0.0
    %1828 = vmatprep.subr.mxu0 0.0
    %1829 = vmatpush1.msra.mxu0 0.0
    %1830 = vmatprep.subr.mxu0 0.0
    %1831 = vmatpush1.msra.mxu0 0.0
    %1832 = vmatprep.subr.mxu0 0.0
    %1833 = vmatpush1.msra.mxu0 0.0
    %1834 = vmatprep.subr.mxu0 0.0
    %1835 = vmatpush1.msra.mxu0 0.0
    %1836 = vmatprep.subr.mxu0 0.0
    %1837 = vmatpush1.msra.mxu0 0.0
    %1838 = vmatprep.subr.mxu0 0.0
    %1839 = vmatpush1.msra.mxu0 0.0
    %1840 = vmatprep.subr.mxu0 0.0
    %1841 = vmatpush1.msra.mxu0 0.0
    %1842 = vmatprep.subr.mxu0 0.0
    %1843 = vmatpush1.msra.mxu0 0.0
    %1844 = vmatprep.subr.mxu0 0.0
    %1845 = vmatpush1.msra.mxu0 0.0
    %1846 = vmatprep.subr.mxu0 0.0
    %1847 = vmatpush1.msra.mxu0 0.0
    %1848 = vmatprep.subr.mxu0 0.0
    %1849 = vmatpush1.msra.mxu0 0.0
    %1850 = vmatprep.subr.mxu0 0.0
    %1851 = vmatpush1.msra.mxu0 0.0
    %1852 = vmatprep.subr.mxu0 0.0
    %1853 = vmatpush1.msra.mxu0 %v245
    %1854 = vmatprep.subr.mxu0 0.0
    %1855 = vmatpush2.msra.mxu0 0.0
    %1856 = vmatprep.subr.mxu0 0.0
    %1857 = vmatpush2.msra.mxu0 0.0
    %1858 = vmatprep.subr.mxu0 0.0
    %1859 = vmatpush2.msra.mxu0 0.0
    %1860 = vmatprep.subr.mxu0 0.0
    %1861 = vmatpush2.msra.mxu0 0.0
    %1862 = vmatprep.subr.mxu0 0.0
    %1863 = vmatpush2.msra.mxu0 0.0
    %1864 = vmatprep.subr.mxu0 0.0
    %1865 = vmatpush2.msra.mxu0 0.0
    %1866 = vmatprep.subr.mxu0 0.0
    %1867 = vmatpush2.msra.mxu0 0.0
    %1868 = vmatprep.subr.mxu0 0.0
    %1869 = vmatpush2.msra.mxu0 0.0
    %1870 = vmatprep.subr.mxu0 0.0
    %1871 = vmatpush2.msra.mxu0 0.0
    %1872 = vmatprep.subr.mxu0 0.0
    %1873 = vmatpush2.msra.mxu0 0.0
    %1874 = vmatprep.subr.mxu0 0.0
    %1875 = vmatpush2.msra.mxu0 0.0
    %1876 = vmatprep.subr.mxu0 0.0
    %1877 = vmatpush2.msra.mxu0 0.0
    %1878 = vmatprep.subr.mxu0 0.0
    %1879 = vmatpush2.msra.mxu0 0.0
    %1880 = vmatprep.subr.mxu0 0.0
    %1881 = vmatpush2.msra.mxu0 0.0
    %1882 = vmatprep.subr.mxu0 0.0
    %1883 = vmatpush2.msra.mxu0 0.0
    %1884 = vmatprep.subr.mxu0 0.0
    %1885 = vmatpush2.msra.mxu0 0.0
    %1886 = vmatprep.mubr.f32.mxu0 0.0
    %1887 = vmatmul.mubr.f32.gmra.mxu0 %v1817
    %v1888 = vpop.f32.mrf.mxu0
    %v1889 = vadd.f32 0.0, %v1888
    %v1890 = vpop.f32.mrf.mxu0
    %1891 = vmatprep.mubr.f32.mxu0 0.0
    %1892 = vmatmul.mubr.f32.gmra.mxu0 %v1820
    %v1893 = vpop.f32.mrf.mxu0
    %v1894 = vadd.f32 0.0, %v1893
    %v1895 = vpop.f32.mrf.mxu0
    %1896 = vdwg.mxu0
    %v1897 = vadd.f32 %v1482, %v1889
    %v1898 = vadd.f32 %v1483, %v1894
    %1899 = vst.msk [vmem:[#allocation11] sm:$0xff] %vm99, %v1897
    %1900 = vst.msk [vmem:[#allocation11 + $0x8] sm:$0xff] %vm99, %v1898
    // Predicated region
    $region42: #{tpu_custom_call.1} parent=1 // pred_check
      _
    $region43: #{tpu_custom_call.1} parent=1 // pred_check_branch
      %1902 = sbr.rel (0) target = $region45
    $region44: #{tpu_custom_call.1} parent=1 // pred_region
      %s1904 = ssub.s32 256, 256
      %1905 = vsyncadd [#allocation4], %s1904
      %s1906 = sshll.u32 [#allocation11], 4
      %s1907 = int_to_ptr.vmem [resolvable:$true] %s1906
      %1912 = dma.vmem_to_hbm [thread:$0]  %s1907, 256, %s5, [#allocation4], 128, 128, 8
    $region45: #{tpu_custom_call.1} parent=1 // pred_fallthru
      _
    // Predicated region
    $region46: #{tpu_custom_call.1} parent=1 // pred_check
      _
    $region47: #{tpu_custom_call.1} parent=1 // pred_check_branch
      %1914 = sbr.rel (0) target = $region49
    $region48: #{tpu_custom_call.1} parent=1 // pred_region
      %1915 = dma.done [#allocation4], 256
    $region49: #{tpu_custom_call.1} parent=1 // pred_fallthru
      _
    %1916 = vsyncpa [#allocation3], 1
    %1917 = vsyncpa [#allocation6], 1
    %1918 = vsyncpa [#allocation9], 1
    %1919 = vsyncpa [#allocation4], 1

</llo_original>
